<compile_context>
chip_gen: v7x
topology: tpu7x:2x2x1
jax: 0.10.0
libtpu: 0.0.40
codegen_flags: <defaults>
</compile_context>

<pallas_src>
import functools

import jax
import jax.numpy as jnp
from jax.experimental import pallas as pl
from jax.experimental.pallas import tpu as pltpu


def _round_up(x, m):
    return (x + m - 1) // m * m


# ------------------------------ Pallas kernel -------------------------------

def _gru_classifier_kernel(x_ref, wih_ref, whh_ref, bcmb_ref, bhn_ref,
                           fcw_ref, fcb_ref, o_ref, io_ref, *, seq_len):
    """One GRU layer per grid step (grid=(L,)), fused FC+sigmoid on the last.

    x_ref    : (T*BP, DU)   bf16  padded input sequence (resident across grid)
    wih_ref  : (1, DU, 128) bf16  layer-l input->gate weights, packed r|z|n
    whh_ref  : (1, H, 128)  bf16  layer-l hidden->gate weights, packed r|z|n
    bcmb_ref : (1, 1, 128)  f32   b_ih + [b_hh_r, b_hh_z, 0] (r/z biases folded)
    bhn_ref  : (1, 1, H)    f32   b_hh_n (must stay inside r * (.))
    fcw_ref  : (H, OP)      bf16  classifier weight (pre-transposed, resident)
    fcb_ref  : (1, OP)      f32   classifier bias (resident)
    o_ref    : (BP, OP)     f32   sigmoid(fc(h_{T-1})), written on last layer
    io_ref   : (T*BP, DU)   bf16  persistent scratch: layer input/output seq
    """
    l = pl.program_id(0)
    num_layers = pl.num_programs(0)

    tb, du = io_ref.shape
    bp = tb // seq_len
    h_dim = whh_ref.shape[1]

    # Layer 0: load the padded input sequence into the layer-io buffer.
    @pl.when(l == 0)
    def _():
        io_ref[...] = x_ref[...]

    # ---- hoisted input projection: one MXU matmul per layer, kept in vregs.
    src = io_ref[...]                                          # (T*BP, DU) bf16
    gi = jnp.dot(src, wih_ref[0],
                 preferred_element_type=jnp.float32)           # (T*BP, 128) f32
    gi = gi + bcmb_ref[0]                                      # r/z biases folded

    w_hh = whh_ref[0]                                          # (H, 128) bf16
    b_hn = jnp.broadcast_to(bhn_ref[0], (bp, h_dim))           # hoisted broadcast

    # ---- serial recurrence, h carried in registers, statically unrolled.
    h = jnp.zeros((bp, h_dim), jnp.float32)
    hs = []
    for t in range(seq_len):
        g = gi[t * bp:(t + 1) * bp, :]                         # (BP, 128)
        gh = jnp.dot(h.astype(jnp.bfloat16), w_hh,
                     preferred_element_type=jnp.float32)       # (BP, 128)
        r = jax.nn.sigmoid(g[:, 0:h_dim] + gh[:, 0:h_dim])
        z = jax.nn.sigmoid(g[:, h_dim:2 * h_dim] + gh[:, h_dim:2 * h_dim])
        n = jnp.tanh(g[:, 2 * h_dim:3 * h_dim]
                     + r * (gh[:, 2 * h_dim:3 * h_dim] + b_hn))
        h = n + z * (h - n)                                    # == (1-z)*n + z*h
        hs.append(h)

    # ---- feed the hidden sequence to the next layer (skip on last layer).
    @pl.when(l + 1 < num_layers)
    def _():
        seq = jnp.concatenate(hs, axis=0).astype(io_ref.dtype)  # (T*BP, H)
        if du == h_dim:
            io_ref[...] = seq
        else:
            io_ref[:, 0:h_dim] = seq

    # ---- fused classifier head on the final hidden state of the last layer.
    @pl.when(l == num_layers - 1)
    def _():
        logits = jnp.dot(h.astype(jnp.bfloat16), fcw_ref[...],
                         preferred_element_type=jnp.float32) + fcb_ref[...]
        o_ref[...] = jax.nn.sigmoid(logits)


# ------------------------------ wrapper --------------------------------------

@functools.partial(jax.jit, static_argnames=("out_size",))
def gru_classifier_forward(x, packed, out_size):
    """x: (T, B, input_size) float32 -> (B, out_size) float32."""
    T, B, D = x.shape
    L, DU, GP = packed["w_ih"].shape
    H = packed["w_hh"].shape[1]
    OP = packed["fc_w"].shape[1]
    BP = _round_up(B, 8)

    x_pad = jnp.zeros((T, BP, DU), jnp.bfloat16)
    x_pad = x_pad.at[:, :B, :D].set(x.astype(jnp.bfloat16))
    x_flat = x_pad.reshape(T * BP, DU)

    kernel = functools.partial(_gru_classifier_kernel, seq_len=T)

    grid_spec = pltpu.PrefetchScalarGridSpec(
        num_scalar_prefetch=0,
        grid=(L,),
        in_specs=[
            pl.BlockSpec((T * BP, DU), lambda l: (0, 0)),     # x (resident)
            pl.BlockSpec((1, DU, GP), lambda l: (l, 0, 0)),   # w_ih[l]
            pl.BlockSpec((1, H, GP), lambda l: (l, 0, 0)),    # w_hh[l]
            pl.BlockSpec((1, 1, GP), lambda l: (l, 0, 0)),    # b_cmb[l]
            pl.BlockSpec((1, 1, H), lambda l: (l, 0, 0)),     # b_hn[l]
            pl.BlockSpec((H, OP), lambda l: (0, 0)),          # fc_w (resident)
            pl.BlockSpec((1, OP), lambda l: (0, 0)),          # fc_b (resident)
        ],
        out_specs=pl.BlockSpec((BP, OP), lambda l: (0, 0)),
        scratch_shapes=[pltpu.VMEM((T * BP, DU), jnp.bfloat16)],  # io scratch
    )

    out_pad = pl.pallas_call(
        kernel,
        out_shape=jax.ShapeDtypeStruct((BP, OP), jnp.float32),
        grid_spec=grid_spec,
        compiler_params=pltpu.CompilerParams(
            dimension_semantics=("arbitrary",)),   # layers are sequential
    )(x_flat, packed["w_ih"], packed["w_hh"], packed["b_cmb"],
      packed["b_hn"], packed["fc_w"], packed["fc_b"])

    return out_pad[:B, :out_size]


# ------------------------- parameters (PyTorch layout) ----------------------

def init_raw_params(key, input_size, hidden_size, output_size, num_layers):
    """PyTorch-shaped params: U(-1/sqrt(H), 1/sqrt(H)), gate order r,z,n."""
    bound = 1.0 / float(hidden_size) ** 0.5
    layers = []
    for l in range(num_layers):
        d_in = input_size if l == 0 else hidden_size
        key, k1, k2, k3, k4 = jax.random.split(key, 5)
        layers.append(dict(
            w_ih=jax.random.uniform(k1, (3 * hidden_size, d_in),
                                    jnp.float32, -bound, bound),
            w_hh=jax.random.uniform(k2, (3 * hidden_size, hidden_size),
                                    jnp.float32, -bound, bound),
            b_ih=jax.random.uniform(k3, (3 * hidden_size,),
                                    jnp.float32, -bound, bound),
            b_hh=jax.random.uniform(k4, (3 * hidden_size,),
                                    jnp.float32, -bound, bound)))
    key, k5, k6 = jax.random.split(key, 3)
    fc_w = jax.random.uniform(k5, (output_size, hidden_size),
                              jnp.float32, -bound, bound)
    fc_b = jax.random.uniform(k6, (output_size,), jnp.float32, -bound, bound)
    return dict(layers=layers, fc_w=fc_w, fc_b=fc_b)


def pack_params(raw, input_size, hidden_size, output_size):
    """Pack params into the gate-packed, lane-aligned, bf16 kernel layout."""
    H = hidden_size
    if 3 * H > 128:
        # TODO(synk): fall back to one 128-lane slot per gate when 3*H > 128.
        raise ValueError("gate-packed layout requires 3*hidden_size <= 128")
    GP = 128                                   # single packed gate block r|z|n
    DU = _round_up(max(input_size, H), 8)      # unified layer-input lane width
    OP = _round_up(output_size, 128)

    w_ih_p, w_hh_p, b_cmb_p, b_hn_p = [], [], [], []
    for l, lyr in enumerate(raw["layers"]):
        d_in = input_size if l == 0 else H
        w_ih_g = lyr["w_ih"].reshape(3, H, d_in)   # gates r, z, n
        w_hh_g = lyr["w_hh"].reshape(3, H, H)
        b_ih_g = lyr["b_ih"].reshape(3, H)
        b_hh_g = lyr["b_hh"].reshape(3, H)

        wi = jnp.zeros((DU, GP), jnp.float32)
        wh = jnp.zeros((H, GP), jnp.float32)
        bc = jnp.zeros((1, GP), jnp.float32)
        for g in range(3):
            wi = wi.at[:d_in, g * H:(g + 1) * H].set(w_ih_g[g].T)
            wh = wh.at[:, g * H:(g + 1) * H].set(w_hh_g[g].T)
        # fold b_hh into the precomputed projection for r and z gates only
        bc = bc.at[0, 0:H].set(b_ih_g[0] + b_hh_g[0])
        bc = bc.at[0, H:2 * H].set(b_ih_g[1] + b_hh_g[1])
        bc = bc.at[0, 2 * H:3 * H].set(b_ih_g[2])
        bn = jnp.zeros((1, H), jnp.float32).at[0, :].set(b_hh_g[2])

        w_ih_p.append(wi.astype(jnp.bfloat16))
        w_hh_p.append(wh.astype(jnp.bfloat16))
        b_cmb_p.append(bc)
        b_hn_p.append(bn)

    fc_w = jnp.zeros((H, OP), jnp.float32).at[:, :output_size].set(
        raw["fc_w"].T)
    fc_b = jnp.zeros((1, OP), jnp.float32).at[0, :output_size].set(raw["fc_b"])

    return dict(w_ih=jnp.stack(w_ih_p), w_hh=jnp.stack(w_hh_p),
                b_cmb=jnp.stack(b_cmb_p), b_hn=jnp.stack(b_hn_p),
                fc_w=fc_w.astype(jnp.bfloat16), fc_b=fc_b)


# ------------------------------ pure-JAX reference --------------------------

def reference_forward(x, raw):
    """Plain f32 jnp re-implementation of the PyTorch forward (self-check)."""
    T = x.shape[0]
    h_seq = x
    for lyr in raw["layers"]:
        H = lyr["w_hh"].shape[1]
        h = jnp.zeros((x.shape[1], H), jnp.float32)
        outs = []
        for t in range(T):
            gi = h_seq[t] @ lyr["w_ih"].T + lyr["b_ih"]
            gh = h @ lyr["w_hh"].T + lyr["b_hh"]
            i_r, i_z, i_n = jnp.split(gi, 3, axis=1)
            h_r, h_z, h_n = jnp.split(gh, 3, axis=1)
            r = jax.nn.sigmoid(i_r + h_r)
            z = jax.nn.sigmoid(i_z + h_z)
            n = jnp.tanh(i_n + r * h_n)
            h = (1.0 - z) * n + z * h
            outs.append(h)
        h_seq = jnp.stack(outs)
    return jax.nn.sigmoid(h_seq[-1] @ raw["fc_w"].T + raw["fc_b"])


# ------------------------------ main -----------------------------------------

if __name__ == "__main__":
    # Small shapes consistent with the module's forward.
    seq_len, batch = 8, 2
    input_size, hidden_size, output_size, num_layers = 16, 32, 4, 2

    key = jax.random.PRNGKey(0)
    key, xkey = jax.random.split(key)
    # seq-first layout, same as torch.nn.GRU default: (T, B, input_size)
    x = jax.random.normal(xkey, (seq_len, batch, input_size), jnp.float32)

    raw = init_raw_params(key, input_size, hidden_size, output_size,
                          num_layers)
    packed = pack_params(raw, input_size, hidden_size, output_size)

    out = gru_classifier_forward(x, packed, out_size=output_size)
    out = jax.block_until_ready(out)

    assert out.shape == (batch, output_size)
    assert bool(jnp.all(jnp.isfinite(out)))
    assert bool(jnp.all((out >= 0.0) & (out <= 1.0)))  # sigmoid range

    # Kernel uses bf16 MXU operands (f32 accumulation / gate math); compare
    # against the full-f32 reference with a correspondingly looser tolerance.
    with jax.default_matmul_precision("highest"):
        ref = reference_forward(x, raw)
    max_err = float(jnp.max(jnp.abs(out - ref)))
    assert max_err < 5e-2, f"mismatch vs pure-JAX reference: {max_err}"

    # TODO(synk): train_model / evaluate / predict (optimizer, BCELoss,
    # thresholding) are host-side training utilities, not part of forward.
    print("KERNEL_OK")
</pallas_src>

<mosaic_0001>
module attributes {stable_mosaic.version = 11 : i64} {
  func.func @_gru_classifier_kernel(%arg0: i32, %arg1: memref<64x32xbf16, #tpu.memory_space<vmem>>, %arg2: memref<1x32x128xbf16, #tpu.memory_space<vmem>>, %arg3: memref<1x32x128xbf16, #tpu.memory_space<vmem>>, %arg4: memref<1x1x128xf32, #tpu.memory_space<vmem>>, %arg5: memref<1x1x32xf32, #tpu.memory_space<vmem>>, %arg6: memref<32x128xbf16, #tpu.memory_space<vmem>>, %arg7: memref<1x128xf32, #tpu.memory_space<vmem>>, %arg8: memref<8x128xf32, #tpu.memory_space<vmem>>, %arg9: memref<64x32xbf16, #tpu.memory_space<vmem>>) attributes {dimension_semantics = [#tpu.dimension_semantics<arbitrary>], iteration_bounds = array<i64: 2>, scalar_prefetch = 0 : i64, scratch_operands = 1 : i64, tpu.core_type = #tpu.core_type<tc>, window_params = [{pipeline_mode = #tpu.pipeline_mode<synchronous>, transform_indices = @transform_0, window_bounds = array<i64: 64, 32>}, {transform_indices = @transform_1, window_bounds = array<i64: 1, 32, 128>}, {transform_indices = @transform_2, window_bounds = array<i64: 1, 32, 128>}, {transform_indices = @transform_3, window_bounds = array<i64: 1, 1, 128>}, {transform_indices = @transform_4, window_bounds = array<i64: 1, 1, 32>}, {pipeline_mode = #tpu.pipeline_mode<synchronous>, transform_indices = @transform_5, window_bounds = array<i64: 32, 128>}, {pipeline_mode = #tpu.pipeline_mode<synchronous>, transform_indices = @transform_6, window_bounds = array<i64: 1, 128>}, {pipeline_mode = #tpu.pipeline_mode<synchronous>, transform_indices = @transform_7, window_bounds = array<i64: 8, 128>}]} {
    %c0_i32 = arith.constant 0 : i32
    %0 = arith.cmpi eq, %arg0, %c0_i32 : i32
    %1 = arith.extui %0 : i1 to i32
    %c0_i32_0 = arith.constant 0 : i32
    %2 = arith.cmpi ne, %1, %c0_i32_0 : i32
    scf.if %2 {
      %c0_42 = arith.constant 0 : index
      %c0_43 = arith.constant 0 : index
      %249 = vector.load %arg1[%c0_42, %c0_43] : memref<64x32xbf16, #tpu.memory_space<vmem>>, vector<64x32xbf16>
      %c0_44 = arith.constant 0 : index
      %c0_45 = arith.constant 0 : index
      %250 = vector.load %arg9[%c0_44, %c0_45] : memref<64x32xbf16, #tpu.memory_space<vmem>>, vector<64x32xbf16>
      tpu.vector_store %arg9[%c0_44, %c0_45], %249 {strides = array<i32>} : memref<64x32xbf16, #tpu.memory_space<vmem>>, vector<64x32xbf16>,
    } else {
    }
    %c0 = arith.constant 0 : index
    %c0_1 = arith.constant 0 : index
    %3 = vector.load %arg9[%c0, %c0_1] : memref<64x32xbf16, #tpu.memory_space<vmem>>, vector<64x32xbf16>
    %c0_2 = arith.constant 0 : index
    %c0_3 = arith.constant 0 : index
    %c0_4 = arith.constant 0 : index
    %4 = vector.load %arg2[%c0_2, %c0_3, %c0_4] : memref<1x32x128xbf16, #tpu.memory_space<vmem>>, vector<1x32x128xbf16>
    %5 = vector.shape_cast %4 : vector<1x32x128xbf16> to vector<32x128xbf16>
    %cst = arith.constant dense<0.000000e+00> : vector<64x128xf32>
    %6 = tpu.matmul %3, %5, %cst {dimension_numbers = #tpu.dot_dimension_numbers<[1], [0], [0], [1], [0, 0, 1, 1], [], []>} : vector<64x32xbf16>, vector<32x128xbf16>, vector<64x128xf32> -> vector<64x128xf32>
    %c0_5 = arith.constant 0 : index
    %c0_6 = arith.constant 0 : index
    %c0_7 = arith.constant 0 : index
    %7 = vector.load %arg4[%c0_5, %c0_6, %c0_7] : memref<1x1x128xf32, #tpu.memory_space<vmem>>, vector<1x1x128xf32>
    %8 = vector.shape_cast %7 : vector<1x1x128xf32> to vector<1x128xf32>
    %9 = vector.broadcast %8 : vector<1x128xf32> to vector<64x128xf32>
    %10 = arith.addf %6, %9 : vector<64x128xf32>
    %c0_8 = arith.constant 0 : index
    %c0_9 = arith.constant 0 : index
    %c0_10 = arith.constant 0 : index
    %11 = vector.load %arg3[%c0_8, %c0_9, %c0_10] : memref<1x32x128xbf16, #tpu.memory_space<vmem>>, vector<1x32x128xbf16>
    %12 = vector.shape_cast %11 : vector<1x32x128xbf16> to vector<32x128xbf16>
    %c0_11 = arith.constant 0 : index
    %c0_12 = arith.constant 0 : index
    %c0_13 = arith.constant 0 : index
    %13 = vector.load %arg5[%c0_11, %c0_12, %c0_13] : memref<1x1x32xf32, #tpu.memory_space<vmem>>, vector<1x1x32xf32>
    %14 = vector.shape_cast %13 : vector<1x1x32xf32> to vector<1x32xf32>
    %15 = vector.shape_cast %14 : vector<1x32xf32> to vector<1x32xf32>
    %16 = vector.broadcast %15 : vector<1x32xf32> to vector<8x32xf32>
    %cst_14 = arith.constant 0.000000e+00 : f32
    %17 = vector.broadcast %cst_14 : f32 to vector<8x32xf32>
    %18 = vector.extract_strided_slice %10 {offsets = [0, 0], sizes = [8, 128], strides = [1, 1]} : vector<64x128xf32> to vector<8x128xf32>
    %19 = arith.truncf %17 : vector<8x32xf32> to vector<8x32xbf16>
    %cst_15 = arith.constant dense<0.000000e+00> : vector<8x128xf32>
    %20 = tpu.matmul %19, %12, %cst_15 {dimension_numbers = #tpu.dot_dimension_numbers<[1], [0], [0], [1], [0, 0, 1, 1], [], []>} : vector<8x32xbf16>, vector<32x128xbf16>, vector<8x128xf32> -> vector<8x128xf32>
    %21 = vector.extract_strided_slice %18 {offsets = [0, 0], sizes = [8, 32], strides = [1, 1]} : vector<8x128xf32> to vector<8x32xf32>
    %22 = vector.extract_strided_slice %20 {offsets = [0, 0], sizes = [8, 32], strides = [1, 1]} : vector<8x128xf32> to vector<8x32xf32>
    %23 = arith.addf %21, %22 : vector<8x32xf32>
    %24 = arith.negf %23 : vector<8x32xf32>
    %25 = math.exp %24 : vector<8x32xf32>
    %cst_16 = arith.constant 1.000000e+00 : f32
    %26 = vector.broadcast %cst_16 : f32 to vector<8x32xf32>
    %27 = arith.addf %26, %25 : vector<8x32xf32>
    %28 = arith.divf %26, %27 : vector<8x32xf32>
    %29 = vector.extract_strided_slice %18 {offsets = [0, 32], sizes = [8, 32], strides = [1, 1]} : vector<8x128xf32> to vector<8x32xf32>
    %30 = vector.extract_strided_slice %20 {offsets = [0, 32], sizes = [8, 32], strides = [1, 1]} : vector<8x128xf32> to vector<8x32xf32>
    %31 = arith.addf %29, %30 : vector<8x32xf32>
    %32 = arith.negf %31 : vector<8x32xf32>
    %33 = math.exp %32 : vector<8x32xf32>
    %cst_17 = arith.constant 1.000000e+00 : f32
    %34 = vector.broadcast %cst_17 : f32 to vector<8x32xf32>
    %35 = arith.addf %34, %33 : vector<8x32xf32>
    %36 = arith.divf %34, %35 : vector<8x32xf32>
    %37 = vector.extract_strided_slice %18 {offsets = [0, 64], sizes = [8, 32], strides = [1, 1]} : vector<8x128xf32> to vector<8x32xf32>
    %38 = vector.extract_strided_slice %20 {offsets = [0, 64], sizes = [8, 32], strides = [1, 1]} : vector<8x128xf32> to vector<8x32xf32>
    %39 = arith.addf %38, %16 : vector<8x32xf32>
    %40 = arith.mulf %28, %39 : vector<8x32xf32>
    %41 = arith.addf %37, %40 : vector<8x32xf32>
    %42 = math.tanh %41 : vector<8x32xf32>
    %43 = arith.subf %17, %42 : vector<8x32xf32>
    %44 = arith.mulf %36, %43 : vector<8x32xf32>
    %45 = arith.addf %42, %44 : vector<8x32xf32>
    %46 = vector.extract_strided_slice %10 {offsets = [8, 0], sizes = [8, 128], strides = [1, 1]} : vector<64x128xf32> to vector<8x128xf32>
    %47 = arith.truncf %45 : vector<8x32xf32> to vector<8x32xbf16>
    %cst_18 = arith.constant dense<0.000000e+00> : vector<8x128xf32>
    %48 = tpu.matmul %47, %12, %cst_18 {dimension_numbers = #tpu.dot_dimension_numbers<[1], [0], [0], [1], [0, 0, 1, 1], [], []>} : vector<8x32xbf16>, vector<32x128xbf16>, vector<8x128xf32> -> vector<8x128xf32>
    %49 = vector.extract_strided_slice %46 {offsets = [0, 0], sizes = [8, 32], strides = [1, 1]} : vector<8x128xf32> to vector<8x32xf32>
    %50 = vector.extract_strided_slice %48 {offsets = [0, 0], sizes = [8, 32], strides = [1, 1]} : vector<8x128xf32> to vector<8x32xf32>
    %51 = arith.addf %49, %50 : vector<8x32xf32>
    %52 = arith.negf %51 : vector<8x32xf32>
    %53 = math.exp %52 : vector<8x32xf32>
    %cst_19 = arith.constant 1.000000e+00 : f32
    %54 = vector.broadcast %cst_19 : f32 to vector<8x32xf32>
    %55 = arith.addf %54, %53 : vector<8x32xf32>
    %56 = arith.divf %54, %55 : vector<8x32xf32>
    %57 = vector.extract_strided_slice %46 {offsets = [0, 32], sizes = [8, 32], strides = [1, 1]} : vector<8x128xf32> to vector<8x32xf32>
    %58 = vector.extract_strided_slice %48 {offsets = [0, 32], sizes = [8, 32], strides = [1, 1]} : vector<8x128xf32> to vector<8x32xf32>
    %59 = arith.addf %57, %58 : vector<8x32xf32>
    %60 = arith.negf %59 : vector<8x32xf32>
    %61 = math.exp %60 : vector<8x32xf32>
    %cst_20 = arith.constant 1.000000e+00 : f32
    %62 = vector.broadcast %cst_20 : f32 to vector<8x32xf32>
    %63 = arith.addf %62, %61 : vector<8x32xf32>
    %64 = arith.divf %62, %63 : vector<8x32xf32>
    %65 = vector.extract_strided_slice %46 {offsets = [0, 64], sizes = [8, 32], strides = [1, 1]} : vector<8x128xf32> to vector<8x32xf32>
    %66 = vector.extract_strided_slice %48 {offsets = [0, 64], sizes = [8, 32], strides = [1, 1]} : vector<8x128xf32> to vector<8x32xf32>
    %67 = arith.addf %66, %16 : vector<8x32xf32>
    %68 = arith.mulf %56, %67 : vector<8x32xf32>
    %69 = arith.addf %65, %68 : vector<8x32xf32>
    %70 = math.tanh %69 : vector<8x32xf32>
    %71 = arith.subf %45, %70 : vector<8x32xf32>
    %72 = arith.mulf %64, %71 : vector<8x32xf32>
    %73 = arith.addf %70, %72 : vector<8x32xf32>
    %74 = vector.extract_strided_slice %10 {offsets = [16, 0], sizes = [8, 128], strides = [1, 1]} : vector<64x128xf32> to vector<8x128xf32>
    %75 = arith.truncf %73 : vector<8x32xf32> to vector<8x32xbf16>
    %cst_21 = arith.constant dense<0.000000e+00> : vector<8x128xf32>
    %76 = tpu.matmul %75, %12, %cst_21 {dimension_numbers = #tpu.dot_dimension_numbers<[1], [0], [0], [1], [0, 0, 1, 1], [], []>} : vector<8x32xbf16>, vector<32x128xbf16>, vector<8x128xf32> -> vector<8x128xf32>
    %77 = vector.extract_strided_slice %74 {offsets = [0, 0], sizes = [8, 32], strides = [1, 1]} : vector<8x128xf32> to vector<8x32xf32>
    %78 = vector.extract_strided_slice %76 {offsets = [0, 0], sizes = [8, 32], strides = [1, 1]} : vector<8x128xf32> to vector<8x32xf32>
    %79 = arith.addf %77, %78 : vector<8x32xf32>
    %80 = arith.negf %79 : vector<8x32xf32>
    %81 = math.exp %80 : vector<8x32xf32>
    %cst_22 = arith.constant 1.000000e+00 : f32
    %82 = vector.broadcast %cst_22 : f32 to vector<8x32xf32>
    %83 = arith.addf %82, %81 : vector<8x32xf32>
    %84 = arith.divf %82, %83 : vector<8x32xf32>
    %85 = vector.extract_strided_slice %74 {offsets = [0, 32], sizes = [8, 32], strides = [1, 1]} : vector<8x128xf32> to vector<8x32xf32>
    %86 = vector.extract_strided_slice %76 {offsets = [0, 32], sizes = [8, 32], strides = [1, 1]} : vector<8x128xf32> to vector<8x32xf32>
    %87 = arith.addf %85, %86 : vector<8x32xf32>
    %88 = arith.negf %87 : vector<8x32xf32>
    %89 = math.exp %88 : vector<8x32xf32>
    %cst_23 = arith.constant 1.000000e+00 : f32
    %90 = vector.broadcast %cst_23 : f32 to vector<8x32xf32>
    %91 = arith.addf %90, %89 : vector<8x32xf32>
    %92 = arith.divf %90, %91 : vector<8x32xf32>
    %93 = vector.extract_strided_slice %74 {offsets = [0, 64], sizes = [8, 32], strides = [1, 1]} : vector<8x128xf32> to vector<8x32xf32>
    %94 = vector.extract_strided_slice %76 {offsets = [0, 64], sizes = [8, 32], strides = [1, 1]} : vector<8x128xf32> to vector<8x32xf32>
    %95 = arith.addf %94, %16 : vector<8x32xf32>
    %96 = arith.mulf %84, %95 : vector<8x32xf32>
    %97 = arith.addf %93, %96 : vector<8x32xf32>
    %98 = math.tanh %97 : vector<8x32xf32>
    %99 = arith.subf %73, %98 : vector<8x32xf32>
    %100 = arith.mulf %92, %99 : vector<8x32xf32>
    %101 = arith.addf %98, %100 : vector<8x32xf32>
    %102 = vector.extract_strided_slice %10 {offsets = [24, 0], sizes = [8, 128], strides = [1, 1]} : vector<64x128xf32> to vector<8x128xf32>
    %103 = arith.truncf %101 : vector<8x32xf32> to vector<8x32xbf16>
    %cst_24 = arith.constant dense<0.000000e+00> : vector<8x128xf32>
    %104 = tpu.matmul %103, %12, %cst_24 {dimension_numbers = #tpu.dot_dimension_numbers<[1], [0], [0], [1], [0, 0, 1, 1], [], []>} : vector<8x32xbf16>, vector<32x128xbf16>, vector<8x128xf32> -> vector<8x128xf32>
    %105 = vector.extract_strided_slice %102 {offsets = [0, 0], sizes = [8, 32], strides = [1, 1]} : vector<8x128xf32> to vector<8x32xf32>
    %106 = vector.extract_strided_slice %104 {offsets = [0, 0], sizes = [8, 32], strides = [1, 1]} : vector<8x128xf32> to vector<8x32xf32>
    %107 = arith.addf %105, %106 : vector<8x32xf32>
    %108 = arith.negf %107 : vector<8x32xf32>
    %109 = math.exp %108 : vector<8x32xf32>
    %cst_25 = arith.constant 1.000000e+00 : f32
    %110 = vector.broadcast %cst_25 : f32 to vector<8x32xf32>
    %111 = arith.addf %110, %109 : vector<8x32xf32>
    %112 = arith.divf %110, %111 : vector<8x32xf32>
    %113 = vector.extract_strided_slice %102 {offsets = [0, 32], sizes = [8, 32], strides = [1, 1]} : vector<8x128xf32> to vector<8x32xf32>
    %114 = vector.extract_strided_slice %104 {offsets = [0, 32], sizes = [8, 32], strides = [1, 1]} : vector<8x128xf32> to vector<8x32xf32>
    %115 = arith.addf %113, %114 : vector<8x32xf32>
    %116 = arith.negf %115 : vector<8x32xf32>
    %117 = math.exp %116 : vector<8x32xf32>
    %cst_26 = arith.constant 1.000000e+00 : f32
    %118 = vector.broadcast %cst_26 : f32 to vector<8x32xf32>
    %119 = arith.addf %118, %117 : vector<8x32xf32>
    %120 = arith.divf %118, %119 : vector<8x32xf32>
    %121 = vector.extract_strided_slice %102 {offsets = [0, 64], sizes = [8, 32], strides = [1, 1]} : vector<8x128xf32> to vector<8x32xf32>
    %122 = vector.extract_strided_slice %104 {offsets = [0, 64], sizes = [8, 32], strides = [1, 1]} : vector<8x128xf32> to vector<8x32xf32>
    %123 = arith.addf %122, %16 : vector<8x32xf32>
    %124 = arith.mulf %112, %123 : vector<8x32xf32>
    %125 = arith.addf %121, %124 : vector<8x32xf32>
    %126 = math.tanh %125 : vector<8x32xf32>
    %127 = arith.subf %101, %126 : vector<8x32xf32>
    %128 = arith.mulf %120, %127 : vector<8x32xf32>
    %129 = arith.addf %126, %128 : vector<8x32xf32>
    %130 = vector.extract_strided_slice %10 {offsets = [32, 0], sizes = [8, 128], strides = [1, 1]} : vector<64x128xf32> to vector<8x128xf32>
    %131 = arith.truncf %129 : vector<8x32xf32> to vector<8x32xbf16>
    %cst_27 = arith.constant dense<0.000000e+00> : vector<8x128xf32>
    %132 = tpu.matmul %131, %12, %cst_27 {dimension_numbers = #tpu.dot_dimension_numbers<[1], [0], [0], [1], [0, 0, 1, 1], [], []>} : vector<8x32xbf16>, vector<32x128xbf16>, vector<8x128xf32> -> vector<8x128xf32>
    %133 = vector.extract_strided_slice %130 {offsets = [0, 0], sizes = [8, 32], strides = [1, 1]} : vector<8x128xf32> to vector<8x32xf32>
    %134 = vector.extract_strided_slice %132 {offsets = [0, 0], sizes = [8, 32], strides = [1, 1]} : vector<8x128xf32> to vector<8x32xf32>
    %135 = arith.addf %133, %134 : vector<8x32xf32>
    %136 = arith.negf %135 : vector<8x32xf32>
    %137 = math.exp %136 : vector<8x32xf32>
    %cst_28 = arith.constant 1.000000e+00 : f32
    %138 = vector.broadcast %cst_28 : f32 to vector<8x32xf32>
    %139 = arith.addf %138, %137 : vector<8x32xf32>
    %140 = arith.divf %138, %139 : vector<8x32xf32>
    %141 = vector.extract_strided_slice %130 {offsets = [0, 32], sizes = [8, 32], strides = [1, 1]} : vector<8x128xf32> to vector<8x32xf32>
    %142 = vector.extract_strided_slice %132 {offsets = [0, 32], sizes = [8, 32], strides = [1, 1]} : vector<8x128xf32> to vector<8x32xf32>
    %143 = arith.addf %141, %142 : vector<8x32xf32>
    %144 = arith.negf %143 : vector<8x32xf32>
    %145 = math.exp %144 : vector<8x32xf32>
    %cst_29 = arith.constant 1.000000e+00 : f32
    %146 = vector.broadcast %cst_29 : f32 to vector<8x32xf32>
    %147 = arith.addf %146, %145 : vector<8x32xf32>
    %148 = arith.divf %146, %147 : vector<8x32xf32>
    %149 = vector.extract_strided_slice %130 {offsets = [0, 64], sizes = [8, 32], strides = [1, 1]} : vector<8x128xf32> to vector<8x32xf32>
    %150 = vector.extract_strided_slice %132 {offsets = [0, 64], sizes = [8, 32], strides = [1, 1]} : vector<8x128xf32> to vector<8x32xf32>
    %151 = arith.addf %150, %16 : vector<8x32xf32>
    %152 = arith.mulf %140, %151 : vector<8x32xf32>
    %153 = arith.addf %149, %152 : vector<8x32xf32>
    %154 = math.tanh %153 : vector<8x32xf32>
    %155 = arith.subf %129, %154 : vector<8x32xf32>
    %156 = arith.mulf %148, %155 : vector<8x32xf32>
    %157 = arith.addf %154, %156 : vector<8x32xf32>
    %158 = vector.extract_strided_slice %10 {offsets = [40, 0], sizes = [8, 128], strides = [1, 1]} : vector<64x128xf32> to vector<8x128xf32>
    %159 = arith.truncf %157 : vector<8x32xf32> to vector<8x32xbf16>
    %cst_30 = arith.constant dense<0.000000e+00> : vector<8x128xf32>
    %160 = tpu.matmul %159, %12, %cst_30 {dimension_numbers = #tpu.dot_dimension_numbers<[1], [0], [0], [1], [0, 0, 1, 1], [], []>} : vector<8x32xbf16>, vector<32x128xbf16>, vector<8x128xf32> -> vector<8x128xf32>
    %161 = vector.extract_strided_slice %158 {offsets = [0, 0], sizes = [8, 32], strides = [1, 1]} : vector<8x128xf32> to vector<8x32xf32>
    %162 = vector.extract_strided_slice %160 {offsets = [0, 0], sizes = [8, 32], strides = [1, 1]} : vector<8x128xf32> to vector<8x32xf32>
    %163 = arith.addf %161, %162 : vector<8x32xf32>
    %164 = arith.negf %163 : vector<8x32xf32>
    %165 = math.exp %164 : vector<8x32xf32>
    %cst_31 = arith.constant 1.000000e+00 : f32
    %166 = vector.broadcast %cst_31 : f32 to vector<8x32xf32>
    %167 = arith.addf %166, %165 : vector<8x32xf32>
    %168 = arith.divf %166, %167 : vector<8x32xf32>
    %169 = vector.extract_strided_slice %158 {offsets = [0, 32], sizes = [8, 32], strides = [1, 1]} : vector<8x128xf32> to vector<8x32xf32>
    %170 = vector.extract_strided_slice %160 {offsets = [0, 32], sizes = [8, 32], strides = [1, 1]} : vector<8x128xf32> to vector<8x32xf32>
    %171 = arith.addf %169, %170 : vector<8x32xf32>
    %172 = arith.negf %171 : vector<8x32xf32>
    %173 = math.exp %172 : vector<8x32xf32>
    %cst_32 = arith.constant 1.000000e+00 : f32
    %174 = vector.broadcast %cst_32 : f32 to vector<8x32xf32>
    %175 = arith.addf %174, %173 : vector<8x32xf32>
    %176 = arith.divf %174, %175 : vector<8x32xf32>
    %177 = vector.extract_strided_slice %158 {offsets = [0, 64], sizes = [8, 32], strides = [1, 1]} : vector<8x128xf32> to vector<8x32xf32>
    %178 = vector.extract_strided_slice %160 {offsets = [0, 64], sizes = [8, 32], strides = [1, 1]} : vector<8x128xf32> to vector<8x32xf32>
    %179 = arith.addf %178, %16 : vector<8x32xf32>
    %180 = arith.mulf %168, %179 : vector<8x32xf32>
    %181 = arith.addf %177, %180 : vector<8x32xf32>
    %182 = math.tanh %181 : vector<8x32xf32>
    %183 = arith.subf %157, %182 : vector<8x32xf32>
    %184 = arith.mulf %176, %183 : vector<8x32xf32>
    %185 = arith.addf %182, %184 : vector<8x32xf32>
    %186 = vector.extract_strided_slice %10 {offsets = [48, 0], sizes = [8, 128], strides = [1, 1]} : vector<64x128xf32> to vector<8x128xf32>
    %187 = arith.truncf %185 : vector<8x32xf32> to vector<8x32xbf16>
    %cst_33 = arith.constant dense<0.000000e+00> : vector<8x128xf32>
    %188 = tpu.matmul %187, %12, %cst_33 {dimension_numbers = #tpu.dot_dimension_numbers<[1], [0], [0], [1], [0, 0, 1, 1], [], []>} : vector<8x32xbf16>, vector<32x128xbf16>, vector<8x128xf32> -> vector<8x128xf32>
    %189 = vector.extract_strided_slice %186 {offsets = [0, 0], sizes = [8, 32], strides = [1, 1]} : vector<8x128xf32> to vector<8x32xf32>
    %190 = vector.extract_strided_slice %188 {offsets = [0, 0], sizes = [8, 32], strides = [1, 1]} : vector<8x128xf32> to vector<8x32xf32>
    %191 = arith.addf %189, %190 : vector<8x32xf32>
    %192 = arith.negf %191 : vector<8x32xf32>
    %193 = math.exp %192 : vector<8x32xf32>
    %cst_34 = arith.constant 1.000000e+00 : f32
    %194 = vector.broadcast %cst_34 : f32 to vector<8x32xf32>
    %195 = arith.addf %194, %193 : vector<8x32xf32>
    %196 = arith.divf %194, %195 : vector<8x32xf32>
    %197 = vector.extract_strided_slice %186 {offsets = [0, 32], sizes = [8, 32], strides = [1, 1]} : vector<8x128xf32> to vector<8x32xf32>
    %198 = vector.extract_strided_slice %188 {offsets = [0, 32], sizes = [8, 32], strides = [1, 1]} : vector<8x128xf32> to vector<8x32xf32>
    %199 = arith.addf %197, %198 : vector<8x32xf32>
    %200 = arith.negf %199 : vector<8x32xf32>
    %201 = math.exp %200 : vector<8x32xf32>
    %cst_35 = arith.constant 1.000000e+00 : f32
    %202 = vector.broadcast %cst_35 : f32 to vector<8x32xf32>
    %203 = arith.addf %202, %201 : vector<8x32xf32>
    %204 = arith.divf %202, %203 : vector<8x32xf32>
    %205 = vector.extract_strided_slice %186 {offsets = [0, 64], sizes = [8, 32], strides = [1, 1]} : vector<8x128xf32> to vector<8x32xf32>
    %206 = vector.extract_strided_slice %188 {offsets = [0, 64], sizes = [8, 32], strides = [1, 1]} : vector<8x128xf32> to vector<8x32xf32>
    %207 = arith.addf %206, %16 : vector<8x32xf32>
    %208 = arith.mulf %196, %207 : vector<8x32xf32>
    %209 = arith.addf %205, %208 : vector<8x32xf32>
    %210 = math.tanh %209 : vector<8x32xf32>
    %211 = arith.subf %185, %210 : vector<8x32xf32>
    %212 = arith.mulf %204, %211 : vector<8x32xf32>
    %213 = arith.addf %210, %212 : vector<8x32xf32>
    %214 = vector.extract_strided_slice %10 {offsets = [56, 0], sizes = [8, 128], strides = [1, 1]} : vector<64x128xf32> to vector<8x128xf32>
    %215 = arith.truncf %213 : vector<8x32xf32> to vector<8x32xbf16>
    %cst_36 = arith.constant dense<0.000000e+00> : vector<8x128xf32>
    %216 = tpu.matmul %215, %12, %cst_36 {dimension_numbers = #tpu.dot_dimension_numbers<[1], [0], [0], [1], [0, 0, 1, 1], [], []>} : vector<8x32xbf16>, vector<32x128xbf16>, vector<8x128xf32> -> vector<8x128xf32>
    %217 = vector.extract_strided_slice %214 {offsets = [0, 0], sizes = [8, 32], strides = [1, 1]} : vector<8x128xf32> to vector<8x32xf32>
    %218 = vector.extract_strided_slice %216 {offsets = [0, 0], sizes = [8, 32], strides = [1, 1]} : vector<8x128xf32> to vector<8x32xf32>
    %219 = arith.addf %217, %218 : vector<8x32xf32>
    %220 = arith.negf %219 : vector<8x32xf32>
    %221 = math.exp %220 : vector<8x32xf32>
    %cst_37 = arith.constant 1.000000e+00 : f32
    %222 = vector.broadcast %cst_37 : f32 to vector<8x32xf32>
    %223 = arith.addf %222, %221 : vector<8x32xf32>
    %224 = arith.divf %222, %223 : vector<8x32xf32>
    %225 = vector.extract_strided_slice %214 {offsets = [0, 32], sizes = [8, 32], strides = [1, 1]} : vector<8x128xf32> to vector<8x32xf32>
    %226 = vector.extract_strided_slice %216 {offsets = [0, 32], sizes = [8, 32], strides = [1, 1]} : vector<8x128xf32> to vector<8x32xf32>
    %227 = arith.addf %225, %226 : vector<8x32xf32>
    %228 = arith.negf %227 : vector<8x32xf32>
    %229 = math.exp %228 : vector<8x32xf32>
    %cst_38 = arith.constant 1.000000e+00 : f32
    %230 = vector.broadcast %cst_38 : f32 to vector<8x32xf32>
    %231 = arith.addf %230, %229 : vector<8x32xf32>
    %232 = arith.divf %230, %231 : vector<8x32xf32>
    %233 = vector.extract_strided_slice %214 {offsets = [0, 64], sizes = [8, 32], strides = [1, 1]} : vector<8x128xf32> to vector<8x32xf32>
    %234 = vector.extract_strided_slice %216 {offsets = [0, 64], sizes = [8, 32], strides = [1, 1]} : vector<8x128xf32> to vector<8x32xf32>
    %235 = arith.addf %234, %16 : vector<8x32xf32>
    %236 = arith.mulf %224, %235 : vector<8x32xf32>
    %237 = arith.addf %233, %236 : vector<8x32xf32>
    %238 = math.tanh %237 : vector<8x32xf32>
    %239 = arith.subf %213, %238 : vector<8x32xf32>
    %240 = arith.mulf %232, %239 : vector<8x32xf32>
    %241 = arith.addf %238, %240 : vector<8x32xf32>
    %c1_i32 = arith.constant 1 : i32
    %242 = arith.addi %arg0, %c1_i32 : i32
    %c2_i32 = arith.constant 2 : i32
    %243 = arith.cmpi slt, %242, %c2_i32 : i32
    %244 = arith.extui %243 : i1 to i32
    %c0_i32_39 = arith.constant 0 : i32
    %245 = arith.cmpi ne, %244, %c0_i32_39 : i32
    scf.if %245 {
      %249 = tpu.concatenate %45, %73, %101, %129, %157, %185, %213, %241 in 0 : vector<8x32xf32>, vector<8x32xf32>, vector<8x32xf32>, vector<8x32xf32>, vector<8x32xf32>, vector<8x32xf32>, vector<8x32xf32>, vector<8x32xf32> -> vector<64x32xf32>
      %250 = arith.truncf %249 : vector<64x32xf32> to vector<64x32xbf16>
      %c0_42 = arith.constant 0 : index
      %c0_43 = arith.constant 0 : index
      %251 = vector.load %arg9[%c0_42, %c0_43] : memref<64x32xbf16, #tpu.memory_space<vmem>>, vector<64x32xbf16>
      tpu.vector_store %arg9[%c0_42, %c0_43], %250 {strides = array<i32>} : memref<64x32xbf16, #tpu.memory_space<vmem>>, vector<64x32xbf16>,
    } else {
    }
    %c1_i32_40 = arith.constant 1 : i32
    %246 = arith.cmpi eq, %arg0, %c1_i32_40 : i32
    %247 = arith.extui %246 : i1 to i32
    %c0_i32_41 = arith.constant 0 : i32
    %248 = arith.cmpi ne, %247, %c0_i32_41 : i32
    scf.if %248 {
      %249 = arith.truncf %241 : vector<8x32xf32> to vector<8x32xbf16>
      %c0_42 = arith.constant 0 : index
      %c0_43 = arith.constant 0 : index
      %250 = vector.load %arg6[%c0_42, %c0_43] : memref<32x128xbf16, #tpu.memory_space<vmem>>, vector<32x128xbf16>
      %cst_44 = arith.constant dense<0.000000e+00> : vector<8x128xf32>
      %251 = tpu.matmul %249, %250, %cst_44 {dimension_numbers = #tpu.dot_dimension_numbers<[1], [0], [0], [1], [0, 0, 1, 1], [], []>} : vector<8x32xbf16>, vector<32x128xbf16>, vector<8x128xf32> -> vector<8x128xf32>
      %c0_45 = arith.constant 0 : index
      %c0_46 = arith.constant 0 : index
      %252 = vector.load %arg7[%c0_45, %c0_46] : memref<1x128xf32, #tpu.memory_space<vmem>>, vector<1x128xf32>
      %253 = vector.broadcast %252 : vector<1x128xf32> to vector<8x128xf32>
      %254 = arith.addf %251, %253 : vector<8x128xf32>
      %255 = arith.negf %254 : vector<8x128xf32>
      %256 = math.exp %255 : vector<8x128xf32>
      %cst_47 = arith.constant 1.000000e+00 : f32
      %257 = vector.broadcast %cst_47 : f32 to vector<8x128xf32>
      %258 = arith.addf %257, %256 : vector<8x128xf32>
      %259 = arith.divf %257, %258 : vector<8x128xf32>
      %c0_48 = arith.constant 0 : index
      %c0_49 = arith.constant 0 : index
      %260 = vector.load %arg8[%c0_48, %c0_49] : memref<8x128xf32, #tpu.memory_space<vmem>>, vector<8x128xf32>
      tpu.vector_store %arg8[%c0_48, %c0_49], %259 {strides = array<i32>} : memref<8x128xf32, #tpu.memory_space<vmem>>, vector<8x128xf32>,
    } else {
    }
    return
  }
  func.func @transform_0(%arg0: i32) -> (i32, i32) {
    %c0_i32 = arith.constant 0 : i32
    %c0_i32_0 = arith.constant 0 : i32
    %c0_i32_1 = arith.constant 0 : i32
    return %c0_i32, %c0_i32_0 : i32, i32
  }
  func.func @transform_1(%arg0: i32) -> (i32, i32, i32) {
    %c0_i32 = arith.constant 0 : i32
    %c0_i32_0 = arith.constant 0 : i32
    %c0_i32_1 = arith.constant 0 : i32
    return %arg0, %c0_i32, %c0_i32_0 : i32, i32, i32
  }
  func.func @transform_2(%arg0: i32) -> (i32, i32, i32) {
    %c0_i32 = arith.constant 0 : i32
    %c0_i32_0 = arith.constant 0 : i32
    %c0_i32_1 = arith.constant 0 : i32
    return %arg0, %c0_i32, %c0_i32_0 : i32, i32, i32
  }
  func.func @transform_3(%arg0: i32) -> (i32, i32, i32) {
    %c0_i32 = arith.constant 0 : i32
    %c0_i32_0 = arith.constant 0 : i32
    %c0_i32_1 = arith.constant 0 : i32
    return %arg0, %c0_i32, %c0_i32_0 : i32, i32, i32
  }
  func.func @transform_4(%arg0: i32) -> (i32, i32, i32) {
    %c0_i32 = arith.constant 0 : i32
    %c0_i32_0 = arith.constant 0 : i32
    %c0_i32_1 = arith.constant 0 : i32
    return %arg0, %c0_i32, %c0_i32_0 : i32, i32, i32
  }
  func.func @transform_5(%arg0: i32) -> (i32, i32) {
    %c0_i32 = arith.constant 0 : i32
    %c0_i32_0 = arith.constant 0 : i32
    %c0_i32_1 = arith.constant 0 : i32
    return %c0_i32, %c0_i32_0 : i32, i32
  }
  func.func @transform_6(%arg0: i32) -> (i32, i32) {
    %c0_i32 = arith.constant 0 : i32
    %c0_i32_0 = arith.constant 0 : i32
    %c0_i32_1 = arith.constant 0 : i32
    return %c0_i32, %c0_i32_0 : i32, i32
  }
  func.func @transform_7(%arg0: i32) -> (i32, i32) {
    %c0_i32 = arith.constant 0 : i32
    %c0_i32_0 = arith.constant 0 : i32
    %c0_i32_1 = arith.constant 0 : i32
    return %c0_i32, %c0_i32_0 : i32, i32
  }
}

</mosaic_0001>

<llo_original>
// kernel: gru_classifier_forward.1
$region0: #{gru_classifier_forward.1}
  #allocation0 [shape = 'u32[]', space=smem, size = 0x4, offset = 0x4, fixed_abs, tag = 'smem constant byte address 0x4 - core index']
  #allocation1 [shape = 'u32[144,128]{1,0:T(1,128)}', space=vmem, size = 0x12000, scoped, tag = 'internal scratch']
  #allocation2 [shape = 'bf16[64,32]{1,0:T(16,128)(2,1)}', space=vmem, size = 0x4000, scoped, tag = 'scratch operand']
  %s0 = inlined_call_operand.vmem [shape: bf16[64,32], index: 0, kind: input, shape index: {}]
  %s1 = inlined_call_operand.vmem [shape: bf16[2,32,128], index: 1, kind: input, shape index: {}]
  %s2 = inlined_call_operand.vmem [shape: bf16[2,32,128], index: 2, kind: input, shape index: {}]
  %s3 = inlined_call_operand.vmem [shape: f32[2,1,128], index: 3, kind: input, shape index: {}]
  %s4 = inlined_call_operand.vmem [shape: f32[2,1,32], index: 4, kind: input, shape index: {}]
  %s5 = inlined_call_operand.hbm [shape: bf16[32,128], index: 5, kind: input, shape index: {}]
  %s6 = inlined_call_operand.vmem [shape: f32[1,128], index: 6, kind: input, shape index: {}]
  %s7 = inlined_call_operand.vmem [shape: f32[8,128], index: 7, kind: output, shape index: {}]
  %s8 = sld [smem:[#allocation0]]
  $region77: #{gru_classifier_forward.1} parent=0
    _
  %s10 = ssub.s32 1, %s8
  %s11 = scalar_select 0, %s10, %s8
  $region1: #{gru_classifier_forward.1} parent=0
    #allocation3 [shape = 'u8[8192]{0}', space=vmem, size = 0x2000, scoped, tag = 'input window, operand 5, single buffered']
    #allocation4 [shape = 's32[2]{0}', space=sflag, size = 0x8, scoped, tag = 'scoped memory for gru_classifier_forward.1']
    %12 = vsyncpa [#allocation4], 0
    loop: start=0, step=1, limit=4
    $region2: #{gru_classifier_forward.1} parent=1 // loop_pre_header
      _
    $region3: #{gru_classifier_forward.1} parent=1 // loop_header
      %s14 = sphi 0, %s18
      %p15 = scmp.ge.s32.totalorder %s14, 4
      %s22 = sphi 0, %s22
      %s24 = sphi 0, %s22
      %s25 = sphi 0, %s24
      %s39 = sphi 0, %s25
      %s45 = sphi 0, %s47
      %s48 = sphi 0, %s45
      %s49 = sphi 0, %s48
      %s65 = sphi 0, %s49
      %s71 = sphi 0, %s73
      %s74 = sphi 0, %s71
      %s75 = sphi 0, %s74
      %s91 = sphi 0, %s75
      %s97 = sphi 0, %s99
      %s100 = sphi 0, %s97
      %s101 = sphi 0, %s100
      %s117 = sphi 0, %s101
      %s123 = sphi 0, %s125
      %s126 = sphi 0, %s123
      %s127 = sphi 0, %s126
      %s143 = sphi 0, %s127
      %s147 = sphi 0, %s147
      %s149 = sphi 0, %s147
      %s150 = sphi 0, %s149
      %s164 = sphi 0, %s150
      %s168 = sphi 0, %s168
      %s170 = sphi 0, %s168
      %s171 = sphi 0, %s170
      %s185 = sphi 0, %s171
      %s189 = sphi 0, %s189
      %s191 = sphi 0, %s189
      %s192 = sphi 0, %s191
      %s206 = sphi 0, %s192
    $region4: #{gru_classifier_forward.1} parent=1 // loop_header_branch
      %17 = sbr.rel (%p15) target = $region8
    $region5: #{gru_classifier_forward.1} parent=1 // loop_body
      %s19 = ssub.s32 %s14, 1
      %s20 = ssub.s32 %s14, 2
      %s21 = sadd.s32 %s14, 1
      %s23 = sadd.s32 %s22, 1
      %p26 = scmp.eq.s32.totalorder %s14, 1
      %p27 = scmp.ne.s32.totalorder %s22, %s24
      %p28 = scmp.eq.s32.totalorder %s14, 0
      %p29 = por %p27, %p28
      %p30 = scmp.ne.s32.totalorder %s22, %s24
      %p31 = scmp.eq.s32.totalorder %s19, 1
      %p32 = por %p30, %p31
      %p33 = scmp.ne.s32.totalorder %s24, %s25
      %p34 = scmp.eq.s32.totalorder %s19, 0
      %p35 = por %p33, %p34
      %p36 = scmp.ne.s32.totalorder %s24, %s25
      %p37 = scmp.eq.s32.totalorder %s20, 1
      %p38 = por %p36, %p37
      %p40 = scmp.ne.s32.totalorder %s25, %s39
      %p41 = scmp.eq.s32.totalorder %s20, 0
      %p42 = por %p40, %p41
      %s43 = ssub.s32 %s14, %s21
      %p44 = scmp.eq.s32.totalorder %s43, 0
      %s46 = sadd.s32 %s45, 1
      %s47 = scalar_select %p44, %s45, %s46
      %p50 = pneg %p44
      %p51 = scmp.eq.s32.totalorder %s14, 1
      %p52 = por %p50, %p51
      %p53 = scmp.ne.s32.totalorder %s45, %s48
      %p54 = scmp.eq.s32.totalorder %s14, 0
      %p55 = por %p53, %p54
      %p56 = scmp.ne.s32.totalorder %s45, %s48
      %p57 = scmp.eq.s32.totalorder %s19, 1
      %p58 = por %p56, %p57
      %p59 = scmp.ne.s32.totalorder %s48, %s49
      %p60 = scmp.eq.s32.totalorder %s19, 0
      %p61 = por %p59, %p60
      %p62 = scmp.ne.s32.totalorder %s48, %s49
      %p63 = scmp.eq.s32.totalorder %s20, 1
      %p64 = por %p62, %p63
      %p66 = scmp.ne.s32.totalorder %s49, %s65
      %p67 = scmp.eq.s32.totalorder %s20, 0
      %p68 = por %p66, %p67
      %s69 = ssub.s32 %s14, %s21
      %p70 = scmp.eq.s32.totalorder %s69, 0
      %s72 = sadd.s32 %s71, 1
      %s73 = scalar_select %p70, %s71, %s72
      %p76 = pneg %p70
      %p77 = scmp.eq.s32.totalorder %s14, 1
      %p78 = por %p76, %p77
      %p79 = scmp.ne.s32.totalorder %s71, %s74
      %p80 = scmp.eq.s32.totalorder %s14, 0
      %p81 = por %p79, %p80
      %p82 = scmp.ne.s32.totalorder %s71, %s74
      %p83 = scmp.eq.s32.totalorder %s19, 1
      %p84 = por %p82, %p83
      %p85 = scmp.ne.s32.totalorder %s74, %s75
      %p86 = scmp.eq.s32.totalorder %s19, 0
      %p87 = por %p85, %p86
      %p88 = scmp.ne.s32.totalorder %s74, %s75
      %p89 = scmp.eq.s32.totalorder %s20, 1
      %p90 = por %p88, %p89
      %p92 = scmp.ne.s32.totalorder %s75, %s91
      %p93 = scmp.eq.s32.totalorder %s20, 0
      %p94 = por %p92, %p93
      %s95 = ssub.s32 %s14, %s21
      %p96 = scmp.eq.s32.totalorder %s95, 0
      %s98 = sadd.s32 %s97, 1
      %s99 = scalar_select %p96, %s97, %s98
      %p102 = pneg %p96
      %p103 = scmp.eq.s32.totalorder %s14, 1
      %p104 = por %p102, %p103
      %p105 = scmp.ne.s32.totalorder %s97, %s100
      %p106 = scmp.eq.s32.totalorder %s14, 0
      %p107 = por %p105, %p106
      %p108 = scmp.ne.s32.totalorder %s97, %s100
      %p109 = scmp.eq.s32.totalorder %s19, 1
      %p110 = por %p108, %p109
      %p111 = scmp.ne.s32.totalorder %s100, %s101
      %p112 = scmp.eq.s32.totalorder %s19, 0
      %p113 = por %p111, %p112
      %p114 = scmp.ne.s32.totalorder %s100, %s101
      %p115 = scmp.eq.s32.totalorder %s20, 1
      %p116 = por %p114, %p115
      %p118 = scmp.ne.s32.totalorder %s101, %s117
      %p119 = scmp.eq.s32.totalorder %s20, 0
      %p120 = por %p118, %p119
      %s121 = ssub.s32 %s14, %s21
      %p122 = scmp.eq.s32.totalorder %s121, 0
      %s124 = sadd.s32 %s123, 1
      %s125 = scalar_select %p122, %s123, %s124
      %p128 = pneg %p122
      %p129 = scmp.eq.s32.totalorder %s14, 1
      %p130 = por %p128, %p129
      %p131 = scmp.ne.s32.totalorder %s123, %s126
      %p132 = scmp.eq.s32.totalorder %s14, 0
      %p133 = por %p131, %p132
      %p134 = scmp.ne.s32.totalorder %s123, %s126
      %p135 = scmp.eq.s32.totalorder %s19, 1
      %p136 = por %p134, %p135
      %p137 = scmp.ne.s32.totalorder %s126, %s127
      %p138 = scmp.eq.s32.totalorder %s19, 0
      %p139 = por %p137, %p138
      %p140 = scmp.ne.s32.totalorder %s126, %s127
      %p141 = scmp.eq.s32.totalorder %s20, 1
      %p142 = por %p140, %p141
      %p144 = scmp.ne.s32.totalorder %s127, %s143
      %p145 = scmp.eq.s32.totalorder %s20, 0
      %p146 = por %p144, %p145
      %s148 = sadd.s32 %s147, 1
      %p151 = scmp.eq.s32.totalorder %s14, 1
      %p152 = scmp.ne.s32.totalorder %s147, %s149
      %p153 = scmp.eq.s32.totalorder %s14, 0
      %p154 = por %p152, %p153
      %p155 = scmp.ne.s32.totalorder %s147, %s149
      %p156 = scmp.eq.s32.totalorder %s19, 1
      %p157 = por %p155, %p156
      %p158 = scmp.ne.s32.totalorder %s149, %s150
      %p159 = scmp.eq.s32.totalorder %s19, 0
      %p160 = por %p158, %p159
      %p161 = scmp.ne.s32.totalorder %s149, %s150
      %p162 = scmp.eq.s32.totalorder %s20, 1
      %p163 = por %p161, %p162
      %p165 = scmp.ne.s32.totalorder %s150, %s164
      %p166 = scmp.eq.s32.totalorder %s20, 0
      %p167 = por %p165, %p166
      %s169 = sadd.s32 %s168, 1
      %p172 = scmp.eq.s32.totalorder %s14, 1
      %p173 = scmp.ne.s32.totalorder %s168, %s170
      %p174 = scmp.eq.s32.totalorder %s14, 0
      %p175 = por %p173, %p174
      %p176 = scmp.ne.s32.totalorder %s168, %s170
      %p177 = scmp.eq.s32.totalorder %s19, 1
      %p178 = por %p176, %p177
      %p179 = scmp.ne.s32.totalorder %s170, %s171
      %p180 = scmp.eq.s32.totalorder %s19, 0
      %p181 = por %p179, %p180
      %p182 = scmp.ne.s32.totalorder %s170, %s171
      %p183 = scmp.eq.s32.totalorder %s20, 1
      %p184 = por %p182, %p183
      %p186 = scmp.ne.s32.totalorder %s171, %s185
      %p187 = scmp.eq.s32.totalorder %s20, 0
      %p188 = por %p186, %p187
      %s190 = sadd.s32 %s189, 1
      %p193 = scmp.eq.s32.totalorder %s14, 1
      %p194 = scmp.ne.s32.totalorder %s189, %s191
      %p195 = scmp.eq.s32.totalorder %s14, 0
      %p196 = por %p194, %p195
      %p197 = scmp.ne.s32.totalorder %s189, %s191
      %p198 = scmp.eq.s32.totalorder %s19, 1
      %p199 = por %p197, %p198
      %p200 = scmp.ne.s32.totalorder %s191, %s192
      %p201 = scmp.eq.s32.totalorder %s19, 0
      %p202 = por %p200, %p201
      %p203 = scmp.ne.s32.totalorder %s191, %s192
      %p204 = scmp.eq.s32.totalorder %s20, 1
      %p205 = por %p203, %p204
      %p207 = scmp.ne.s32.totalorder %s192, %s206
      %p208 = scmp.eq.s32.totalorder %s20, 0
      %p209 = por %p207, %p208
      %p210 = scmp.le.s32.totalorder 1, %s14
      %p211 = scmp.lt.s32.totalorder %s14, 3
      %p212 = pnand %p210, %p211
      %p213 = pneg %p212
      // Predicated region
      $region9: #{gru_classifier_forward.1} parent=5 // pred_check
        _
      $region10: #{gru_classifier_forward.1} parent=5 // pred_check_branch
        %215 = sbr.rel (%p212) target = $region12
      $region11: #{gru_classifier_forward.1} parent=5 // pred_region
        %s216 = ssub.s32 %s14, 1
        // Predicated region
        $region13: #{gru_classifier_forward.1} parent=11 // pred_check
          %p217 = pneg %p35
        $region14: #{gru_classifier_forward.1} parent=11 // pred_check_branch
          %219 = sbr.rel (%p217) target = $region16
        $region15: #{gru_classifier_forward.1} parent=11 // pred_region
          _
        $region16: #{gru_classifier_forward.1} parent=11 // pred_fallthru
          _
        // Predicated region
        $region17: #{gru_classifier_forward.1} parent=11 // pred_check
          %p220 = pneg %p160
        $region18: #{gru_classifier_forward.1} parent=11 // pred_check_branch
          %222 = sbr.rel (%p220) target = $region20
        $region19: #{gru_classifier_forward.1} parent=11 // pred_region
          %s224 = ssub.s32 256, 256
          %225 = vsyncadd [#allocation4], %s224
          %s226 = sshll.u32 [#allocation3], 4
          %s227 = int_to_ptr.vmem [resolvable:$true] %s226
          %232 = dma.hbm_to_vmem [thread:$0]  %s5, 256, %s227, [#allocation4], 64, 64, 4
        $region20: #{gru_classifier_forward.1} parent=11 // pred_fallthru
          _
        // Predicated region
        $region21: #{gru_classifier_forward.1} parent=11 // pred_check
          %p233 = pneg %p181
        $region22: #{gru_classifier_forward.1} parent=11 // pred_check_branch
          %235 = sbr.rel (%p233) target = $region24
        $region23: #{gru_classifier_forward.1} parent=11 // pred_region
          _
        $region24: #{gru_classifier_forward.1} parent=11 // pred_fallthru
          _
      $region12: #{gru_classifier_forward.1} parent=5 // pred_fallthru
        _
      %p236 = scmp.lt.s32.totalorder %s14, 2
      // Predicated region
      $region25: #{gru_classifier_forward.1} parent=5 // pred_check
        %p237 = pneg %p236
      $region26: #{gru_classifier_forward.1} parent=5 // pred_check_branch
        %239 = sbr.rel (%p237) target = $region28
      $region27: #{gru_classifier_forward.1} parent=5 // pred_region
        // Predicated region
        $region29: #{gru_classifier_forward.1} parent=27 // pred_check
          %p240 = pneg %p55
        $region30: #{gru_classifier_forward.1} parent=27 // pred_check_branch
          %242 = sbr.rel (%p240) target = $region32
        $region31: #{gru_classifier_forward.1} parent=27 // pred_region
          %p243 = scmp.lt.s32.totalorder %s14, 1
          %s244 = scalar_select %p243, %s14, 1
          %s245 = smul.addr %s244, 4
          %s246 = smul.addr %s245, 4
          %s247 = scalar_lea.vmem %s1, %s246
        $region32: #{gru_classifier_forward.1} parent=27 // pred_fallthru
          _
        // Predicated region
        $region33: #{gru_classifier_forward.1} parent=27 // pred_check
          %p248 = pneg %p81
        $region34: #{gru_classifier_forward.1} parent=27 // pred_check_branch
          %250 = sbr.rel (%p248) target = $region36
        $region35: #{gru_classifier_forward.1} parent=27 // pred_region
          %p251 = scmp.lt.s32.totalorder %s14, 1
          %s252 = scalar_select %p251, %s14, 1
          %s253 = smul.addr %s252, 4
          %s254 = smul.addr %s253, 4
          %s255 = scalar_lea.vmem %s2, %s254
        $region36: #{gru_classifier_forward.1} parent=27 // pred_fallthru
          _
        // Predicated region
        $region37: #{gru_classifier_forward.1} parent=27 // pred_check
          %p256 = pneg %p107
        $region38: #{gru_classifier_forward.1} parent=27 // pred_check_branch
          %258 = sbr.rel (%p256) target = $region40
        $region39: #{gru_classifier_forward.1} parent=27 // pred_region
          %p259 = scmp.lt.s32.totalorder %s14, 1
          %s260 = scalar_select %p259, %s14, 1
          %s261 = scalar_lea.vmem %s3, %s260
        $region40: #{gru_classifier_forward.1} parent=27 // pred_fallthru
          _
        // Predicated region
        $region41: #{gru_classifier_forward.1} parent=27 // pred_check
          %p262 = pneg %p133
        $region42: #{gru_classifier_forward.1} parent=27 // pred_check_branch
          %264 = sbr.rel (%p262) target = $region44
        $region43: #{gru_classifier_forward.1} parent=27 // pred_region
          %p265 = scmp.lt.s32.totalorder %s14, 1
          %s266 = scalar_select %p265, %s14, 1
          %s267 = scalar_lea.vmem %s4, %s266
        $region44: #{gru_classifier_forward.1} parent=27 // pred_fallthru
          _
      $region28: #{gru_classifier_forward.1} parent=5 // pred_fallthru
        _
      %p268 = scmp.le.s32.totalorder 1, %s14
      %p269 = scmp.lt.s32.totalorder %s14, 3
      %p270 = pnand %p268, %p269
      %p271 = pneg %p270
      // Predicated region
      $region45: #{gru_classifier_forward.1} parent=5 // pred_check
        _
      $region46: #{gru_classifier_forward.1} parent=5 // pred_check_branch
        %273 = sbr.rel (%p270) target = $region48
      $region47: #{gru_classifier_forward.1} parent=5 // pred_region
        %s274 = ssub.s32 %s14, 1
        // Predicated region
        $region49: #{gru_classifier_forward.1} parent=47 // pred_check
          %p275 = pneg %p160
        $region50: #{gru_classifier_forward.1} parent=47 // pred_check_branch
          %277 = sbr.rel (%p275) target = $region52
        $region51: #{gru_classifier_forward.1} parent=47 // pred_region
          %278 = dma.done [#allocation4], 256
        $region52: #{gru_classifier_forward.1} parent=47 // pred_fallthru
          _
        %p279 = pneg %p35
        %p280 = pneg %p32
        %p281 = scmp.lt.s32.totalorder %s19, 1
        %s282 = scalar_select %p281, %s19, 1
        %s283 = smul.addr %s282, 4
        %s284 = smul.addr %s283, 4
        %s285 = scalar_lea.vmem %s1, %s284
        %p286 = pneg %p61
        %p287 = pneg %p58
        %p288 = scmp.lt.s32.totalorder %s19, 1
        %s289 = scalar_select %p288, %s19, 1
        %s290 = smul.addr %s289, 4
        %s291 = smul.addr %s290, 4
        %s292 = scalar_lea.vmem %s2, %s291
        %p293 = pneg %p87
        %p294 = pneg %p84
        %p295 = scmp.lt.s32.totalorder %s19, 1
        %s296 = scalar_select %p295, %s19, 1
        %s297 = scalar_lea.vmem %s3, %s296
        %p298 = pneg %p113
        %p299 = pneg %p110
        %p300 = scmp.lt.s32.totalorder %s19, 1
        %s301 = scalar_select %p300, %s19, 1
        %s302 = scalar_lea.vmem %s4, %s301
        %p303 = pneg %p139
        %p304 = pneg %p136
        %p305 = pneg %p160
        %p306 = pneg %p157
        %p307 = pneg %p181
        %p308 = pneg %p178
        %p309 = pneg %p202
        %p310 = pneg %p199
        %p311 = scmp.lt.s32.totalorder %s19, 1
        %s312 = scalar_select %p311, %s19, 1
        %s313 = smul.addr %s312, 4
        %s314 = smul.addr %s313, 4
        %s315 = scalar_lea.vmem %s1, %s314
        %p316 = scmp.lt.s32.totalorder %s19, 1
        %s317 = scalar_select %p316, %s19, 1
        %s318 = smul.addr %s317, 4
        %s319 = smul.addr %s318, 4
        %s320 = scalar_lea.vmem %s2, %s319
        %p321 = scmp.lt.s32.totalorder %s19, 1
        %s322 = scalar_select %p321, %s19, 1
        %s323 = scalar_lea.vmem %s3, %s322
        %p324 = scmp.lt.s32.totalorder %s19, 1
        %s325 = scalar_select %p324, %s19, 1
        %s326 = scalar_lea.vmem %s4, %s325
        %p328 = scmp.eq.s32.totalorder %s19, 0
        // Predicated region
        $region53: #{gru_classifier_forward.1} parent=47 // pred_check
          %p329 = pneg %p328
        $region54: #{gru_classifier_forward.1} parent=47 // pred_check_branch
          %331 = sbr.rel (%p329) target = $region56
        $region55: #{gru_classifier_forward.1} parent=47 // pred_region
          %v332 = vld [vmem:[%s0] sm:$0xf]
          %v333 = vld [vmem:[%s0 + $0x4] sm:$0xf]
          %v334 = vld [vmem:[%s0 + $0x8] sm:$0xf]
          %v335 = vld [vmem:[%s0 + $0xc] sm:$0xf]
          %v336 = vld [vmem:[%s0 + $0x10] sm:$0xf]
          %v337 = vld [vmem:[%s0 + $0x14] sm:$0xf]
          %v338 = vld [vmem:[%s0 + $0x18] sm:$0xf]
          %v339 = vld [vmem:[%s0 + $0x1c] sm:$0xf]
          %v348 = vunpack.c.l.b16 %v332
          %v349 = vunpack.c.l.b16 %v333
          %v350 = vunpack.c.l.b16 %v334
          %v351 = vunpack.c.l.b16 %v335
          %v352 = vunpack.c.l.b16 %v336
          %v353 = vunpack.c.l.b16 %v337
          %v354 = vunpack.c.l.b16 %v338
          %v355 = vunpack.c.l.b16 %v339
          %v356 = vpack.c.b16 %v349, %v348
          %v357 = vpack.c.b16 %v351, %v350
          %v358 = vpack.c.b16 %v353, %v352
          %v359 = vpack.c.b16 %v355, %v354
          %vm364 = vcmask 261120
          %365 = vst.msk [vmem:[#allocation2] sm:$0xff] %vm364, %v356
          %366 = vst.msk [vmem:[#allocation2 + $0x8] sm:$0xff] %vm364, %v357
          %367 = vst.msk [vmem:[#allocation2 + $0x10] sm:$0xff] %vm364, %v358
          %368 = vst.msk [vmem:[#allocation2 + $0x18] sm:$0xff] %vm364, %v359
        $region56: #{gru_classifier_forward.1} parent=47 // pred_fallthru
          _
        %v369 = vld [vmem:[#allocation2] sm:$0xff]
        %v370 = vld [vmem:[#allocation2 + $0x8] sm:$0xff]
        %v371 = vld [vmem:[#allocation2 + $0x10] sm:$0xff]
        %v372 = vld [vmem:[#allocation2 + $0x18] sm:$0xff]
        %v373 = vld [vmem:[%s315] sm:$0xf]
        %v374 = vld [vmem:[%s315 + $0x4] sm:$0xf]
        %v375 = vld [vmem:[%s315 + $0x8] sm:$0xf]
        %v376 = vld [vmem:[%s315 + $0xc] sm:$0xf]
        %v377 = vld [vmem:[%s323] sm:$0x1]
        %v379 = vlaneseq
        %v380 = vshrl.u32 %v379, 7
        %v381 = vsub.s32 0, %v380
        %v382 = vrot.slane %v377, %v381
        %v388 = vunpack.c.l.b16 %v373
        %v389 = vunpack.c.l.b16 %v374
        %v390 = vunpack.c.l.b16 %v375
        %v391 = vunpack.c.l.b16 %v376
        %v392 = vpack.c.b16 %v389, %v388
        %v393 = vpack.c.b16 %v391, %v390
        %vm396 = vcmask 261120
        %v398 = vsel %vm396, %v369, 0
        %v401 = vsel %vm396, %v370, 0
        %v404 = vsel %vm396, %v371, 0
        %v407 = vsel %vm396, %v372, 0
        %409 = vmatprep.subr.bf16.mxu0 0
        %410 = vmatpush1.bf16.msra.mxu0 %v392
        %411 = vmatprep.subr.bf16.mxu0 0
        %412 = vmatpush1.bf16.msra.mxu0 %v393
        %413 = vmatprep.subr.bf16.mxu0 0
        %414 = vmatpush1.bf16.msra.mxu0 0
        %415 = vmatprep.subr.bf16.mxu0 0
        %416 = vmatpush1.bf16.msra.mxu0 0
        %417 = vmatprep.subr.bf16.mxu0 0
        %418 = vmatpush1.bf16.msra.mxu0 0
        %419 = vmatprep.subr.bf16.mxu0 0
        %420 = vmatpush1.bf16.msra.mxu0 0
        %421 = vmatprep.subr.bf16.mxu0 0
        %422 = vmatpush1.bf16.msra.mxu0 0
        %423 = vmatprep.subr.bf16.mxu0 0
        %424 = vmatpush1.bf16.msra.mxu0 0
        %425 = vmatprep.subr.bf16.mxu0 0
        %426 = vmatpush1.bf16.msra.mxu0 0
        %427 = vmatprep.subr.bf16.mxu0 0
        %428 = vmatpush1.bf16.msra.mxu0 0
        %429 = vmatprep.subr.bf16.mxu0 0
        %430 = vmatpush1.bf16.msra.mxu0 0
        %431 = vmatprep.subr.bf16.mxu0 0
        %432 = vmatpush1.bf16.msra.mxu0 0
        %433 = vmatprep.subr.bf16.mxu0 0
        %434 = vmatpush1.bf16.msra.mxu0 0
        %435 = vmatprep.subr.bf16.mxu0 0
        %436 = vmatpush1.bf16.msra.mxu0 0
        %437 = vmatprep.subr.bf16.mxu0 0
        %438 = vmatpush1.bf16.msra.mxu0 0
        %439 = vmatprep.subr.bf16.mxu0 0
        %440 = vmatpush1.bf16.msra.mxu0 0
        %441 = vmatprep.mubr.bf16.mxu0 0
        %442 = vmatmul.mubr.bf16.gmra.mrb[0].mxu0 %v398
        %v443 = vpop.f32.mrb[0].mxu0
        %v444 = vadd.f32 %v382, %v443
        %v445 = vpop.f32.mrb[0].mxu0
        %v446 = vpop.f32.mrb[0].mxu0
        %v447 = vadd.f32 %v382, %v446
        %v448 = vpop.f32.mrb[0].mxu0
        %449 = vmatprep.mubr.bf16.mxu0 0
        %450 = vmatmul.mubr.bf16.gmra.mrb[0].mxu0 %v401
        %v451 = vpop.f32.mrb[0].mxu0
        %v452 = vadd.f32 %v382, %v451
        %v453 = vpop.f32.mrb[0].mxu0
        %v454 = vpop.f32.mrb[0].mxu0
        %v455 = vadd.f32 %v382, %v454
        %v456 = vpop.f32.mrb[0].mxu0
        %457 = vmatprep.mubr.bf16.mxu0 0
        %458 = vmatmul.mubr.bf16.gmra.mrb[0].mxu0 %v404
        %v459 = vpop.f32.mrb[0].mxu0
        %v460 = vadd.f32 %v382, %v459
        %v461 = vpop.f32.mrb[0].mxu0
        %v462 = vpop.f32.mrb[0].mxu0
        %v463 = vadd.f32 %v382, %v462
        %v464 = vpop.f32.mrb[0].mxu0
        %465 = vmatprep.mubr.bf16.mxu0 0
        %466 = vmatmul.mubr.bf16.gmra.mrb[0].mxu0 %v407
        %v467 = vpop.f32.mrb[0].mxu0
        %v468 = vadd.f32 %v382, %v467
        %v469 = vpop.f32.mrb[0].mxu0
        %v470 = vpop.f32.mrb[0].mxu0
        %v471 = vadd.f32 %v382, %v470
        %v472 = vpop.f32.mrb[0].mxu0
        %473 = vdwg.mxu0
        %v474 = vld [vmem:[%s320] sm:$0xf]
        %v475 = vld [vmem:[%s320 + $0x4] sm:$0xf]
        %v476 = vld [vmem:[%s320 + $0x8] sm:$0xf]
        %v477 = vld [vmem:[%s320 + $0xc] sm:$0xf]
        %v478 = vld [vmem:[%s326] sm:$0x1]
        %v480 = vlaneseq
        %v481 = vshrl.u32 %v480, 7
        %v482 = vsub.s32 0, %v481
        %v483 = vrot.slane %v478, %v482
        %v488 = vunpack.c.l.b16 %v474
        %v489 = vunpack.c.l.b16 %v475
        %v490 = vunpack.c.l.b16 %v476
        %v491 = vunpack.c.l.b16 %v477
        %v492 = vpack.c.b16 %v489, %v488
        %v493 = vpack.c.b16 %v491, %v490
        %v497 = vsel %vm396, 0, 0
        %499 = vmatprep.subr.bf16.mxu0 0
        %500 = vmatpush1.bf16.msra.mxu0 %v492
        %501 = vmatprep.subr.bf16.mxu0 0
        %502 = vmatpush1.bf16.msra.mxu0 %v493
        %503 = vmatprep.subr.bf16.mxu0 0
        %504 = vmatpush1.bf16.msra.mxu0 0
        %505 = vmatprep.subr.bf16.mxu0 0
        %506 = vmatpush1.bf16.msra.mxu0 0
        %507 = vmatprep.subr.bf16.mxu0 0
        %508 = vmatpush1.bf16.msra.mxu0 0
        %509 = vmatprep.subr.bf16.mxu0 0
        %510 = vmatpush1.bf16.msra.mxu0 0
        %511 = vmatprep.subr.bf16.mxu0 0
        %512 = vmatpush1.bf16.msra.mxu0 0
        %513 = vmatprep.subr.bf16.mxu0 0
        %514 = vmatpush1.bf16.msra.mxu0 0
        %515 = vmatprep.subr.bf16.mxu0 0
        %516 = vmatpush1.bf16.msra.mxu0 0
        %517 = vmatprep.subr.bf16.mxu0 0
        %518 = vmatpush1.bf16.msra.mxu0 0
        %519 = vmatprep.subr.bf16.mxu0 0
        %520 = vmatpush1.bf16.msra.mxu0 0
        %521 = vmatprep.subr.bf16.mxu0 0
        %522 = vmatpush1.bf16.msra.mxu0 0
        %523 = vmatprep.subr.bf16.mxu0 0
        %524 = vmatpush1.bf16.msra.mxu0 0
        %525 = vmatprep.subr.bf16.mxu0 0
        %526 = vmatpush1.bf16.msra.mxu0 0
        %527 = vmatprep.subr.bf16.mxu0 0
        %528 = vmatpush1.bf16.msra.mxu0 0
        %529 = vmatprep.subr.bf16.mxu0 0
        %530 = vmatpush1.bf16.msra.mxu0 0
        %531 = vmatprep.mubr.bf16.mxu0 0
        %532 = vmatmul.mubr.bf16.gmra.mrb[0].mxu0 %v497
        %v533 = vpop.f32.mrb[0].mxu0
        %v534 = vadd.f32 0.0, %v533
        %v535 = vpop.f32.mrb[0].mxu0
        %v536 = vpop.f32.mrb[0].mxu0
        %v537 = vpop.f32.mrb[0].mxu0
        %538 = vdwg.mxu0
        %v539 = vadd.f32 %v444, %v534
        %v540 = vxor.u32 %v539, 2147483648
        %v541 = vmul.f32 %v540, 1.442695
        %v542 = vpow.pop %v541
        %v543 = vadd.f32 %v542, 1.0
        %v544 = vrcp.pop %v543
        %v545 = vmul.f32 1.0, %v544
        %546 = vrot.lane.b32.xlu0 %v483, 64
        %v547 = vpop.permute.xlu0 %546
        %v549 = vadd.f32 %v534, %v547
        %551 = vrot.lane.b32.xlu0 %v549, 64
        %v552 = vpop.permute.xlu0 %551
        %v554 = vmul.f32 %v545, %v552
        %556 = vrot.lane.b32.xlu0 %v554, 64
        %v557 = vpop.permute.xlu0 %556
        %v559 = vadd.f32 %v444, %v557
        %v560 = vtanh.pop %v559
        %v561 = vsub.f32 0.0, %v560
        %563 = vrot.lane.b32.xlu0 %v561, 96
        %v564 = vpop.permute.xlu0 %563
        %v566 = vmul.f32 %v545, %v564
        %568 = vrot.lane.b32.xlu0 %v566, 32
        %v569 = vpop.permute.xlu0 %568
        %v571 = vadd.f32 %v560, %v569
        %v572 = vpack.c.bf16 %v571, %v571
        %574 = vrot.lane.b32.xlu0 %v572, 64
        %v575 = vpop.permute.xlu0 %574
        %v577 = vsel %vm396, %v575, 0
        %579 = vmatprep.subr.bf16.mxu0 0
        %580 = vmatpush1.bf16.msra.mxu0 %v492
        %581 = vmatprep.subr.bf16.mxu0 0
        %582 = vmatpush1.bf16.msra.mxu0 %v493
        %583 = vmatprep.subr.bf16.mxu0 0
        %584 = vmatpush1.bf16.msra.mxu0 0
        %585 = vmatprep.subr.bf16.mxu0 0
        %586 = vmatpush1.bf16.msra.mxu0 0
        %587 = vmatprep.subr.bf16.mxu0 0
        %588 = vmatpush1.bf16.msra.mxu0 0
        %589 = vmatprep.subr.bf16.mxu0 0
        %590 = vmatpush1.bf16.msra.mxu0 0
        %591 = vmatprep.subr.bf16.mxu0 0
        %592 = vmatpush1.bf16.msra.mxu0 0
        %593 = vmatprep.subr.bf16.mxu0 0
        %594 = vmatpush1.bf16.msra.mxu0 0
        %595 = vmatprep.subr.bf16.mxu0 0
        %596 = vmatpush1.bf16.msra.mxu0 0
        %597 = vmatprep.subr.bf16.mxu0 0
        %598 = vmatpush1.bf16.msra.mxu0 0
        %599 = vmatprep.subr.bf16.mxu0 0
        %600 = vmatpush1.bf16.msra.mxu0 0
        %601 = vmatprep.subr.bf16.mxu0 0
        %602 = vmatpush1.bf16.msra.mxu0 0
        %603 = vmatprep.subr.bf16.mxu0 0
        %604 = vmatpush1.bf16.msra.mxu0 0
        %605 = vmatprep.subr.bf16.mxu0 0
        %606 = vmatpush1.bf16.msra.mxu0 0
        %607 = vmatprep.subr.bf16.mxu0 0
        %608 = vmatpush1.bf16.msra.mxu0 0
        %609 = vmatprep.subr.bf16.mxu0 0
        %610 = vmatpush1.bf16.msra.mxu0 0
        %611 = vmatprep.mubr.bf16.mxu0 0
        %612 = vmatmul.mubr.bf16.gmra.mrb[0].mxu0 %v577
        %v613 = vpop.f32.mrb[0].mxu0
        %v614 = vadd.f32 0.0, %v613
        %v615 = vpop.f32.mrb[0].mxu0
        %v616 = vpop.f32.mrb[0].mxu0
        %v617 = vpop.f32.mrb[0].mxu0
        %618 = vdwg.mxu0
        %v619 = vadd.f32 %v447, %v614
        %v620 = vxor.u32 %v619, 2147483648
        %v621 = vmul.f32 %v620, 1.442695
        %v622 = vpow.pop %v621
        %v623 = vadd.f32 %v622, 1.0
        %v624 = vrcp.pop %v623
        %v625 = vmul.f32 1.0, %v624
        %v626 = vadd.f32 %v614, %v547
        %628 = vrot.lane.b32.xlu0 %v626, 64
        %v629 = vpop.permute.xlu0 %628
        %v631 = vmul.f32 %v625, %v629
        %633 = vrot.lane.b32.xlu0 %v631, 64
        %v634 = vpop.permute.xlu0 %633
        %v636 = vadd.f32 %v447, %v634
        %v637 = vtanh.pop %v636
        %v638 = vsub.f32 %v571, %v637
        %640 = vrot.lane.b32.xlu0 %v638, 96
        %v641 = vpop.permute.xlu0 %640
        %v643 = vmul.f32 %v625, %v641
        %645 = vrot.lane.b32.xlu0 %v643, 32
        %v646 = vpop.permute.xlu0 %645
        %v648 = vadd.f32 %v637, %v646
        %v649 = vpack.c.bf16 %v648, %v648
        %651 = vrot.lane.b32.xlu0 %v649, 64
        %v652 = vpop.permute.xlu0 %651
        %v654 = vsel %vm396, %v652, 0
        %656 = vmatprep.subr.bf16.mxu0 0
        %657 = vmatpush1.bf16.msra.mxu0 %v492
        %658 = vmatprep.subr.bf16.mxu0 0
        %659 = vmatpush1.bf16.msra.mxu0 %v493
        %660 = vmatprep.subr.bf16.mxu0 0
        %661 = vmatpush1.bf16.msra.mxu0 0
        %662 = vmatprep.subr.bf16.mxu0 0
        %663 = vmatpush1.bf16.msra.mxu0 0
        %664 = vmatprep.subr.bf16.mxu0 0
        %665 = vmatpush1.bf16.msra.mxu0 0
        %666 = vmatprep.subr.bf16.mxu0 0
        %667 = vmatpush1.bf16.msra.mxu0 0
        %668 = vmatprep.subr.bf16.mxu0 0
        %669 = vmatpush1.bf16.msra.mxu0 0
        %670 = vmatprep.subr.bf16.mxu0 0
        %671 = vmatpush1.bf16.msra.mxu0 0
        %672 = vmatprep.subr.bf16.mxu0 0
        %673 = vmatpush1.bf16.msra.mxu0 0
        %674 = vmatprep.subr.bf16.mxu0 0
        %675 = vmatpush1.bf16.msra.mxu0 0
        %676 = vmatprep.subr.bf16.mxu0 0
        %677 = vmatpush1.bf16.msra.mxu0 0
        %678 = vmatprep.subr.bf16.mxu0 0
        %679 = vmatpush1.bf16.msra.mxu0 0
        %680 = vmatprep.subr.bf16.mxu0 0
        %681 = vmatpush1.bf16.msra.mxu0 0
        %682 = vmatprep.subr.bf16.mxu0 0
        %683 = vmatpush1.bf16.msra.mxu0 0
        %684 = vmatprep.subr.bf16.mxu0 0
        %685 = vmatpush1.bf16.msra.mxu0 0
        %686 = vmatprep.subr.bf16.mxu0 0
        %687 = vmatpush1.bf16.msra.mxu0 0
        %688 = vmatprep.mubr.bf16.mxu0 0
        %689 = vmatmul.mubr.bf16.gmra.mrb[0].mxu0 %v654
        %v690 = vpop.f32.mrb[0].mxu0
        %v691 = vadd.f32 0.0, %v690
        %v692 = vpop.f32.mrb[0].mxu0
        %v693 = vpop.f32.mrb[0].mxu0
        %v694 = vpop.f32.mrb[0].mxu0
        %695 = vdwg.mxu0
        %v696 = vadd.f32 %v452, %v691
        %v697 = vxor.u32 %v696, 2147483648
        %v698 = vmul.f32 %v697, 1.442695
        %v699 = vpow.pop %v698
        %v700 = vadd.f32 %v699, 1.0
        %v701 = vrcp.pop %v700
        %v702 = vmul.f32 1.0, %v701
        %v703 = vadd.f32 %v691, %v547
        %705 = vrot.lane.b32.xlu0 %v703, 64
        %v706 = vpop.permute.xlu0 %705
        %v708 = vmul.f32 %v702, %v706
        %710 = vrot.lane.b32.xlu0 %v708, 64
        %v711 = vpop.permute.xlu0 %710
        %v713 = vadd.f32 %v452, %v711
        %v714 = vtanh.pop %v713
        %v715 = vsub.f32 %v648, %v714
        %717 = vrot.lane.b32.xlu0 %v715, 96
        %v718 = vpop.permute.xlu0 %717
        %v720 = vmul.f32 %v702, %v718
        %722 = vrot.lane.b32.xlu0 %v720, 32
        %v723 = vpop.permute.xlu0 %722
        %v725 = vadd.f32 %v714, %v723
        %v726 = vpack.c.bf16 %v725, %v725
        %728 = vrot.lane.b32.xlu0 %v726, 64
        %v729 = vpop.permute.xlu0 %728
        %v731 = vsel %vm396, %v729, 0
        %733 = vmatprep.subr.bf16.mxu0 0
        %734 = vmatpush1.bf16.msra.mxu0 %v492
        %735 = vmatprep.subr.bf16.mxu0 0
        %736 = vmatpush1.bf16.msra.mxu0 %v493
        %737 = vmatprep.subr.bf16.mxu0 0
        %738 = vmatpush1.bf16.msra.mxu0 0
        %739 = vmatprep.subr.bf16.mxu0 0
        %740 = vmatpush1.bf16.msra.mxu0 0
        %741 = vmatprep.subr.bf16.mxu0 0
        %742 = vmatpush1.bf16.msra.mxu0 0
        %743 = vmatprep.subr.bf16.mxu0 0
        %744 = vmatpush1.bf16.msra.mxu0 0
        %745 = vmatprep.subr.bf16.mxu0 0
        %746 = vmatpush1.bf16.msra.mxu0 0
        %747 = vmatprep.subr.bf16.mxu0 0
        %748 = vmatpush1.bf16.msra.mxu0 0
        %749 = vmatprep.subr.bf16.mxu0 0
        %750 = vmatpush1.bf16.msra.mxu0 0
        %751 = vmatprep.subr.bf16.mxu0 0
        %752 = vmatpush1.bf16.msra.mxu0 0
        %753 = vmatprep.subr.bf16.mxu0 0
        %754 = vmatpush1.bf16.msra.mxu0 0
        %755 = vmatprep.subr.bf16.mxu0 0
        %756 = vmatpush1.bf16.msra.mxu0 0
        %757 = vmatprep.subr.bf16.mxu0 0
        %758 = vmatpush1.bf16.msra.mxu0 0
        %759 = vmatprep.subr.bf16.mxu0 0
        %760 = vmatpush1.bf16.msra.mxu0 0
        %761 = vmatprep.subr.bf16.mxu0 0
        %762 = vmatpush1.bf16.msra.mxu0 0
        %763 = vmatprep.subr.bf16.mxu0 0
        %764 = vmatpush1.bf16.msra.mxu0 0
        %765 = vmatprep.mubr.bf16.mxu0 0
        %766 = vmatmul.mubr.bf16.gmra.mrb[0].mxu0 %v731
        %v767 = vpop.f32.mrb[0].mxu0
        %v768 = vadd.f32 0.0, %v767
        %v769 = vpop.f32.mrb[0].mxu0
        %v770 = vpop.f32.mrb[0].mxu0
        %v771 = vpop.f32.mrb[0].mxu0
        %772 = vdwg.mxu0
        %v773 = vadd.f32 %v455, %v768
        %v774 = vxor.u32 %v773, 2147483648
        %v775 = vmul.f32 %v774, 1.442695
        %v776 = vpow.pop %v775
        %v777 = vadd.f32 %v776, 1.0
        %v778 = vrcp.pop %v777
        %v779 = vmul.f32 1.0, %v778
        %v780 = vadd.f32 %v768, %v547
        %782 = vrot.lane.b32.xlu0 %v780, 64
        %v783 = vpop.permute.xlu0 %782
        %v785 = vmul.f32 %v779, %v783
        %787 = vrot.lane.b32.xlu0 %v785, 64
        %v788 = vpop.permute.xlu0 %787
        %v790 = vadd.f32 %v455, %v788
        %v791 = vtanh.pop %v790
        %v792 = vsub.f32 %v725, %v791
        %794 = vrot.lane.b32.xlu0 %v792, 96
        %v795 = vpop.permute.xlu0 %794
        %v797 = vmul.f32 %v779, %v795
        %799 = vrot.lane.b32.xlu0 %v797, 32
        %v800 = vpop.permute.xlu0 %799
        %v802 = vadd.f32 %v791, %v800
        %v803 = vpack.c.bf16 %v802, %v802
        %805 = vrot.lane.b32.xlu0 %v803, 64
        %v806 = vpop.permute.xlu0 %805
        %v808 = vsel %vm396, %v806, 0
        %810 = vmatprep.subr.bf16.mxu0 0
        %811 = vmatpush1.bf16.msra.mxu0 %v492
        %812 = vmatprep.subr.bf16.mxu0 0
        %813 = vmatpush1.bf16.msra.mxu0 %v493
        %814 = vmatprep.subr.bf16.mxu0 0
        %815 = vmatpush1.bf16.msra.mxu0 0
        %816 = vmatprep.subr.bf16.mxu0 0
        %817 = vmatpush1.bf16.msra.mxu0 0
        %818 = vmatprep.subr.bf16.mxu0 0
        %819 = vmatpush1.bf16.msra.mxu0 0
        %820 = vmatprep.subr.bf16.mxu0 0
        %821 = vmatpush1.bf16.msra.mxu0 0
        %822 = vmatprep.subr.bf16.mxu0 0
        %823 = vmatpush1.bf16.msra.mxu0 0
        %824 = vmatprep.subr.bf16.mxu0 0
        %825 = vmatpush1.bf16.msra.mxu0 0
        %826 = vmatprep.subr.bf16.mxu0 0
        %827 = vmatpush1.bf16.msra.mxu0 0
        %828 = vmatprep.subr.bf16.mxu0 0
        %829 = vmatpush1.bf16.msra.mxu0 0
        %830 = vmatprep.subr.bf16.mxu0 0
        %831 = vmatpush1.bf16.msra.mxu0 0
        %832 = vmatprep.subr.bf16.mxu0 0
        %833 = vmatpush1.bf16.msra.mxu0 0
        %834 = vmatprep.subr.bf16.mxu0 0
        %835 = vmatpush1.bf16.msra.mxu0 0
        %836 = vmatprep.subr.bf16.mxu0 0
        %837 = vmatpush1.bf16.msra.mxu0 0
        %838 = vmatprep.subr.bf16.mxu0 0
        %839 = vmatpush1.bf16.msra.mxu0 0
        %840 = vmatprep.subr.bf16.mxu0 0
        %841 = vmatpush1.bf16.msra.mxu0 0
        %842 = vmatprep.mubr.bf16.mxu0 0
        %843 = vmatmul.mubr.bf16.gmra.mrb[0].mxu0 %v808
        %v844 = vpop.f32.mrb[0].mxu0
        %v845 = vadd.f32 0.0, %v844
        %v846 = vpop.f32.mrb[0].mxu0
        %v847 = vpop.f32.mrb[0].mxu0
        %v848 = vpop.f32.mrb[0].mxu0
        %849 = vdwg.mxu0
        %v850 = vadd.f32 %v460, %v845
        %v851 = vxor.u32 %v850, 2147483648
        %v852 = vmul.f32 %v851, 1.442695
        %v853 = vpow.pop %v852
        %v854 = vadd.f32 %v853, 1.0
        %v855 = vrcp.pop %v854
        %v856 = vmul.f32 1.0, %v855
        %v857 = vadd.f32 %v845, %v547
        %859 = vrot.lane.b32.xlu0 %v857, 64
        %v860 = vpop.permute.xlu0 %859
        %v862 = vmul.f32 %v856, %v860
        %864 = vrot.lane.b32.xlu0 %v862, 64
        %v865 = vpop.permute.xlu0 %864
        %v867 = vadd.f32 %v460, %v865
        %v868 = vtanh.pop %v867
        %v869 = vsub.f32 %v802, %v868
        %871 = vrot.lane.b32.xlu0 %v869, 96
        %v872 = vpop.permute.xlu0 %871
        %v874 = vmul.f32 %v856, %v872
        %876 = vrot.lane.b32.xlu0 %v874, 32
        %v877 = vpop.permute.xlu0 %876
        %v879 = vadd.f32 %v868, %v877
        %v880 = vpack.c.bf16 %v879, %v879
        %882 = vrot.lane.b32.xlu0 %v880, 64
        %v883 = vpop.permute.xlu0 %882
        %v885 = vsel %vm396, %v883, 0
        %887 = vmatprep.subr.bf16.mxu0 0
        %888 = vmatpush1.bf16.msra.mxu0 %v492
        %889 = vmatprep.subr.bf16.mxu0 0
        %890 = vmatpush1.bf16.msra.mxu0 %v493
        %891 = vmatprep.subr.bf16.mxu0 0
        %892 = vmatpush1.bf16.msra.mxu0 0
        %893 = vmatprep.subr.bf16.mxu0 0
        %894 = vmatpush1.bf16.msra.mxu0 0
        %895 = vmatprep.subr.bf16.mxu0 0
        %896 = vmatpush1.bf16.msra.mxu0 0
        %897 = vmatprep.subr.bf16.mxu0 0
        %898 = vmatpush1.bf16.msra.mxu0 0
        %899 = vmatprep.subr.bf16.mxu0 0
        %900 = vmatpush1.bf16.msra.mxu0 0
        %901 = vmatprep.subr.bf16.mxu0 0
        %902 = vmatpush1.bf16.msra.mxu0 0
        %903 = vmatprep.subr.bf16.mxu0 0
        %904 = vmatpush1.bf16.msra.mxu0 0
        %905 = vmatprep.subr.bf16.mxu0 0
        %906 = vmatpush1.bf16.msra.mxu0 0
        %907 = vmatprep.subr.bf16.mxu0 0
        %908 = vmatpush1.bf16.msra.mxu0 0
        %909 = vmatprep.subr.bf16.mxu0 0
        %910 = vmatpush1.bf16.msra.mxu0 0
        %911 = vmatprep.subr.bf16.mxu0 0
        %912 = vmatpush1.bf16.msra.mxu0 0
        %913 = vmatprep.subr.bf16.mxu0 0
        %914 = vmatpush1.bf16.msra.mxu0 0
        %915 = vmatprep.subr.bf16.mxu0 0
        %916 = vmatpush1.bf16.msra.mxu0 0
        %917 = vmatprep.subr.bf16.mxu0 0
        %918 = vmatpush1.bf16.msra.mxu0 0
        %919 = vmatprep.mubr.bf16.mxu0 0
        %920 = vmatmul.mubr.bf16.gmra.mrb[0].mxu0 %v885
        %v921 = vpop.f32.mrb[0].mxu0
        %v922 = vadd.f32 0.0, %v921
        %v923 = vpop.f32.mrb[0].mxu0
        %v924 = vpop.f32.mrb[0].mxu0
        %v925 = vpop.f32.mrb[0].mxu0
        %926 = vdwg.mxu0
        %v927 = vadd.f32 %v463, %v922
        %v928 = vxor.u32 %v927, 2147483648
        %v929 = vmul.f32 %v928, 1.442695
        %v930 = vpow.pop %v929
        %v931 = vadd.f32 %v930, 1.0
        %v932 = vrcp.pop %v931
        %v933 = vmul.f32 1.0, %v932
        %v934 = vadd.f32 %v922, %v547
        %936 = vrot.lane.b32.xlu0 %v934, 64
        %v937 = vpop.permute.xlu0 %936
        %v939 = vmul.f32 %v933, %v937
        %941 = vrot.lane.b32.xlu0 %v939, 64
        %v942 = vpop.permute.xlu0 %941
        %v944 = vadd.f32 %v463, %v942
        %v945 = vtanh.pop %v944
        %v946 = vsub.f32 %v879, %v945
        %948 = vrot.lane.b32.xlu0 %v946, 96
        %v949 = vpop.permute.xlu0 %948
        %v951 = vmul.f32 %v933, %v949
        %953 = vrot.lane.b32.xlu0 %v951, 32
        %v954 = vpop.permute.xlu0 %953
        %v956 = vadd.f32 %v945, %v954
        %v957 = vpack.c.bf16 %v956, %v956
        %959 = vrot.lane.b32.xlu0 %v957, 64
        %v960 = vpop.permute.xlu0 %959
        %v962 = vsel %vm396, %v960, 0
        %964 = vmatprep.subr.bf16.mxu0 0
        %965 = vmatpush1.bf16.msra.mxu0 %v492
        %966 = vmatprep.subr.bf16.mxu0 0
        %967 = vmatpush1.bf16.msra.mxu0 %v493
        %968 = vmatprep.subr.bf16.mxu0 0
        %969 = vmatpush1.bf16.msra.mxu0 0
        %970 = vmatprep.subr.bf16.mxu0 0
        %971 = vmatpush1.bf16.msra.mxu0 0
        %972 = vmatprep.subr.bf16.mxu0 0
        %973 = vmatpush1.bf16.msra.mxu0 0
        %974 = vmatprep.subr.bf16.mxu0 0
        %975 = vmatpush1.bf16.msra.mxu0 0
        %976 = vmatprep.subr.bf16.mxu0 0
        %977 = vmatpush1.bf16.msra.mxu0 0
        %978 = vmatprep.subr.bf16.mxu0 0
        %979 = vmatpush1.bf16.msra.mxu0 0
        %980 = vmatprep.subr.bf16.mxu0 0
        %981 = vmatpush1.bf16.msra.mxu0 0
        %982 = vmatprep.subr.bf16.mxu0 0
        %983 = vmatpush1.bf16.msra.mxu0 0
        %984 = vmatprep.subr.bf16.mxu0 0
        %985 = vmatpush1.bf16.msra.mxu0 0
        %986 = vmatprep.subr.bf16.mxu0 0
        %987 = vmatpush1.bf16.msra.mxu0 0
        %988 = vmatprep.subr.bf16.mxu0 0
        %989 = vmatpush1.bf16.msra.mxu0 0
        %990 = vmatprep.subr.bf16.mxu0 0
        %991 = vmatpush1.bf16.msra.mxu0 0
        %992 = vmatprep.subr.bf16.mxu0 0
        %993 = vmatpush1.bf16.msra.mxu0 0
        %994 = vmatprep.subr.bf16.mxu0 0
        %995 = vmatpush1.bf16.msra.mxu0 0
        %996 = vmatprep.mubr.bf16.mxu0 0
        %997 = vmatmul.mubr.bf16.gmra.mrb[0].mxu0 %v962
        %v998 = vpop.f32.mrb[0].mxu0
        %v999 = vadd.f32 0.0, %v998
        %v1000 = vpop.f32.mrb[0].mxu0
        %v1001 = vpop.f32.mrb[0].mxu0
        %v1002 = vpop.f32.mrb[0].mxu0
        %1003 = vdwg.mxu0
        %v1004 = vadd.f32 %v468, %v999
        %v1005 = vxor.u32 %v1004, 2147483648
        %v1006 = vmul.f32 %v1005, 1.442695
        %v1007 = vpow.pop %v1006
        %v1008 = vadd.f32 %v1007, 1.0
        %v1009 = vrcp.pop %v1008
        %v1010 = vmul.f32 1.0, %v1009
        %v1011 = vadd.f32 %v999, %v547
        %1013 = vrot.lane.b32.xlu0 %v1011, 64
        %v1014 = vpop.permute.xlu0 %1013
        %v1016 = vmul.f32 %v1010, %v1014
        %1018 = vrot.lane.b32.xlu0 %v1016, 64
        %v1019 = vpop.permute.xlu0 %1018
        %v1021 = vadd.f32 %v468, %v1019
        %v1022 = vtanh.pop %v1021
        %v1023 = vsub.f32 %v956, %v1022
        %1025 = vrot.lane.b32.xlu0 %v1023, 96
        %v1026 = vpop.permute.xlu0 %1025
        %v1028 = vmul.f32 %v1010, %v1026
        %1030 = vrot.lane.b32.xlu0 %v1028, 32
        %v1031 = vpop.permute.xlu0 %1030
        %v1033 = vadd.f32 %v1022, %v1031
        %v1034 = vpack.c.bf16 %v1033, %v1033
        %1036 = vrot.lane.b32.xlu0 %v1034, 64
        %v1037 = vpop.permute.xlu0 %1036
        %v1039 = vsel %vm396, %v1037, 0
        %1041 = vmatprep.subr.bf16.mxu0 0
        %1042 = vmatpush1.bf16.msra.mxu0 %v492
        %1043 = vmatprep.subr.bf16.mxu0 0
        %1044 = vmatpush1.bf16.msra.mxu0 %v493
        %1045 = vmatprep.subr.bf16.mxu0 0
        %1046 = vmatpush1.bf16.msra.mxu0 0
        %1047 = vmatprep.subr.bf16.mxu0 0
        %1048 = vmatpush1.bf16.msra.mxu0 0
        %1049 = vmatprep.subr.bf16.mxu0 0
        %1050 = vmatpush1.bf16.msra.mxu0 0
        %1051 = vmatprep.subr.bf16.mxu0 0
        %1052 = vmatpush1.bf16.msra.mxu0 0
        %1053 = vmatprep.subr.bf16.mxu0 0
        %1054 = vmatpush1.bf16.msra.mxu0 0
        %1055 = vmatprep.subr.bf16.mxu0 0
        %1056 = vmatpush1.bf16.msra.mxu0 0
        %1057 = vmatprep.subr.bf16.mxu0 0
        %1058 = vmatpush1.bf16.msra.mxu0 0
        %1059 = vmatprep.subr.bf16.mxu0 0
        %1060 = vmatpush1.bf16.msra.mxu0 0
        %1061 = vmatprep.subr.bf16.mxu0 0
        %1062 = vmatpush1.bf16.msra.mxu0 0
        %1063 = vmatprep.subr.bf16.mxu0 0
        %1064 = vmatpush1.bf16.msra.mxu0 0
        %1065 = vmatprep.subr.bf16.mxu0 0
        %1066 = vmatpush1.bf16.msra.mxu0 0
        %1067 = vmatprep.subr.bf16.mxu0 0
        %1068 = vmatpush1.bf16.msra.mxu0 0
        %1069 = vmatprep.subr.bf16.mxu0 0
        %1070 = vmatpush1.bf16.msra.mxu0 0
        %1071 = vmatprep.subr.bf16.mxu0 0
        %1072 = vmatpush1.bf16.msra.mxu0 0
        %1073 = vmatprep.mubr.bf16.mxu0 0
        %1074 = vmatmul.mubr.bf16.gmra.mrb[0].mxu0 %v1039
        %v1075 = vpop.f32.mrb[0].mxu0
        %v1076 = vadd.f32 0.0, %v1075
        %v1077 = vpop.f32.mrb[0].mxu0
        %v1078 = vpop.f32.mrb[0].mxu0
        %v1079 = vpop.f32.mrb[0].mxu0
        %1080 = vdwg.mxu0
        %v1081 = vadd.f32 %v471, %v1076
        %v1082 = vxor.u32 %v1081, 2147483648
        %v1083 = vmul.f32 %v1082, 1.442695
        %v1084 = vpow.pop %v1083
        %v1085 = vadd.f32 %v1084, 1.0
        %v1086 = vrcp.pop %v1085
        %v1087 = vmul.f32 1.0, %v1086
        %v1088 = vadd.f32 %v1076, %v547
        %1090 = vrot.lane.b32.xlu0 %v1088, 64
        %v1091 = vpop.permute.xlu0 %1090
        %v1093 = vmul.f32 %v1087, %v1091
        %1095 = vrot.lane.b32.xlu0 %v1093, 64
        %v1096 = vpop.permute.xlu0 %1095
        %v1098 = vadd.f32 %v471, %v1096
        %v1099 = vtanh.pop %v1098
        %v1100 = vsub.f32 %v1033, %v1099
        %1102 = vrot.lane.b32.xlu0 %v1100, 96
        %v1103 = vpop.permute.xlu0 %1102
        %v1105 = vmul.f32 %v1087, %v1103
        %1107 = vrot.lane.b32.xlu0 %v1105, 32
        %v1108 = vpop.permute.xlu0 %1107
        %v1110 = vadd.f32 %v1099, %v1108
        %s1111 = sadd.s32 %s19, 1
        %p1112 = scmp.lt.s32.totalorder %s1111, 2
        // Predicated region
        $region57: #{gru_classifier_forward.1} parent=47 // pred_check
          %p1113 = pneg %p1112
        $region58: #{gru_classifier_forward.1} parent=47 // pred_check_branch
          %1115 = sbr.rel (%p1113) target = $region60
        $region59: #{gru_classifier_forward.1} parent=47 // pred_region
          %v1116 = vpack.c.bf16 %v648, %v571
          %v1117 = vpack.c.bf16 %v802, %v725
          %v1118 = vpack.c.bf16 %v956, %v879
          %v1119 = vpack.c.bf16 %v1110, %v1033
          %1124 = vrot.lane.b32.xlu0 %v1116, 64
          %v1125 = vpop.permute.xlu0 %1124
          %1126 = vrot.lane.b32.xlu0 %v1117, 64
          %v1127 = vpop.permute.xlu0 %1126
          %1128 = vrot.lane.b32.xlu0 %v1118, 64
          %v1129 = vpop.permute.xlu0 %1128
          %1130 = vrot.lane.b32.xlu0 %v1119, 64
          %v1131 = vpop.permute.xlu0 %1130
          %1136 = vst.msk [vmem:[#allocation2] sm:$0xff] %vm396, %v1125
          %1137 = vst.msk [vmem:[#allocation2 + $0x8] sm:$0xff] %vm396, %v1127
          %1138 = vst.msk [vmem:[#allocation2 + $0x10] sm:$0xff] %vm396, %v1129
          %1139 = vst.msk [vmem:[#allocation2 + $0x18] sm:$0xff] %vm396, %v1131
        $region60: #{gru_classifier_forward.1} parent=47 // pred_fallthru
          _
        %p1140 = scmp.eq.s32.totalorder %s19, 1
        // Predicated region
        $region61: #{gru_classifier_forward.1} parent=47 // pred_check
          %p1141 = pneg %p1140
        $region62: #{gru_classifier_forward.1} parent=47 // pred_check_branch
          %1143 = sbr.rel (%p1141) target = $region64
        $region63: #{gru_classifier_forward.1} parent=47 // pred_region
          %v1144 = vpack.c.bf16 %v1110, %v1110
          %v1145 = vld [vmem:[#allocation3] sm:$0xf]
          %v1146 = vld [vmem:[#allocation3 + $0x4] sm:$0xf]
          %v1147 = vld [vmem:[#allocation3 + $0x8] sm:$0xf]
          %v1148 = vld [vmem:[#allocation3 + $0xc] sm:$0xf]
          %v1149 = vld [vmem:[%s6] sm:$0x1]
          %v1151 = vlaneseq
          %v1152 = vshrl.u32 %v1151, 7
          %v1153 = vsub.s32 0, %v1152
          %v1154 = vrot.slane %v1149, %v1153
          %1157 = vrot.lane.b32.xlu0 %v1144, 64
          %v1158 = vpop.permute.xlu0 %1157
          %v1163 = vunpack.c.l.b16 %v1145
          %v1164 = vunpack.c.l.b16 %v1146
          %v1165 = vunpack.c.l.b16 %v1147
          %v1166 = vunpack.c.l.b16 %v1148
          %v1167 = vpack.c.b16 %v1164, %v1163
          %v1168 = vpack.c.b16 %v1166, %v1165
          %v1172 = vsel %vm396, %v1158, 0
          %1174 = vmatprep.subr.bf16.mxu0 0
          %1175 = vmatpush1.bf16.msra.mxu0 %v1167
          %1176 = vmatprep.subr.bf16.mxu0 0
          %1177 = vmatpush1.bf16.msra.mxu0 %v1168
          %1178 = vmatprep.subr.bf16.mxu0 0
          %1179 = vmatpush1.bf16.msra.mxu0 0
          %1180 = vmatprep.subr.bf16.mxu0 0
          %1181 = vmatpush1.bf16.msra.mxu0 0
          %1182 = vmatprep.subr.bf16.mxu0 0
          %1183 = vmatpush1.bf16.msra.mxu0 0
          %1184 = vmatprep.subr.bf16.mxu0 0
          %1185 = vmatpush1.bf16.msra.mxu0 0
          %1186 = vmatprep.subr.bf16.mxu0 0
          %1187 = vmatpush1.bf16.msra.mxu0 0
          %1188 = vmatprep.subr.bf16.mxu0 0
          %1189 = vmatpush1.bf16.msra.mxu0 0
          %1190 = vmatprep.subr.bf16.mxu0 0
          %1191 = vmatpush1.bf16.msra.mxu0 0
          %1192 = vmatprep.subr.bf16.mxu0 0
          %1193 = vmatpush1.bf16.msra.mxu0 0
          %1194 = vmatprep.subr.bf16.mxu0 0
          %1195 = vmatpush1.bf16.msra.mxu0 0
          %1196 = vmatprep.subr.bf16.mxu0 0
          %1197 = vmatpush1.bf16.msra.mxu0 0
          %1198 = vmatprep.subr.bf16.mxu0 0
          %1199 = vmatpush1.bf16.msra.mxu0 0
          %1200 = vmatprep.subr.bf16.mxu0 0
          %1201 = vmatpush1.bf16.msra.mxu0 0
          %1202 = vmatprep.subr.bf16.mxu0 0
          %1203 = vmatpush1.bf16.msra.mxu0 0
          %1204 = vmatprep.subr.bf16.mxu0 0
          %1205 = vmatpush1.bf16.msra.mxu0 0
          %1206 = vmatprep.mubr.bf16.mxu0 0
          %1207 = vmatmul.mubr.bf16.gmra.mrb[0].mxu0 %v1172
          %v1208 = vpop.f32.mrb[0].mxu0
          %v1209 = vadd.f32 %v1154, %v1208
          %v1210 = vpop.f32.mrb[0].mxu0
          %v1211 = vpop.f32.mrb[0].mxu0
          %v1212 = vpop.f32.mrb[0].mxu0
          %1213 = vdwg.mxu0
          %v1214 = vxor.u32 %v1209, 2147483648
          %v1215 = vmul.f32 %v1214, 1.442695
          %v1216 = vpow.pop %v1215
          %v1217 = vadd.f32 %v1216, 1.0
          %v1218 = vrcp.pop %v1217
          %v1219 = vmul.f32 1.0, %v1218
          %1220 = vst [vmem:[%s7] sm:$0xff] %v1219
        $region64: #{gru_classifier_forward.1} parent=47 // pred_fallthru
          _
        // Predicated region
        $region65: #{gru_classifier_forward.1} parent=47 // pred_check
          %p1221 = pneg %p199
        $region66: #{gru_classifier_forward.1} parent=47 // pred_check_branch
          %1223 = sbr.rel (%p1221) target = $region68
        $region67: #{gru_classifier_forward.1} parent=47 // pred_region
          _
        $region68: #{gru_classifier_forward.1} parent=47 // pred_fallthru
          _
        // Predicated region
        $region69: #{gru_classifier_forward.1} parent=47 // pred_check
          %p1224 = pneg %p199
        $region70: #{gru_classifier_forward.1} parent=47 // pred_check_branch
          %1226 = sbr.rel (%p1224) target = $region72
        $region71: #{gru_classifier_forward.1} parent=47 // pred_region
          _
        $region72: #{gru_classifier_forward.1} parent=47 // pred_fallthru
          _
      $region48: #{gru_classifier_forward.1} parent=5 // pred_fallthru
        _
      %p1227 = scmp.le.s32.totalorder 2, %s14
      // Predicated region
      $region73: #{gru_classifier_forward.1} parent=5 // pred_check
        %p1228 = pneg %p1227
      $region74: #{gru_classifier_forward.1} parent=5 // pred_check_branch
        %1230 = sbr.rel (%p1228) target = $region76
      $region75: #{gru_classifier_forward.1} parent=5 // pred_region
        %s1231 = ssub.s32 %s14, 2
      $region76: #{gru_classifier_forward.1} parent=5 // pred_fallthru
        _
    $region6: #{gru_classifier_forward.1} parent=1 // loop_footer
      %s18 = sadd.s32 1, %s14
    $region7: #{gru_classifier_forward.1} parent=1 // loop_footer_branch
      %13 = sbr.rel target = $region3
    $region8: #{gru_classifier_forward.1} parent=1 // loop_exit
      _
    %1232 = vsyncpa [#allocation4], 1
    %s1233 = scalar_lea.sflag [#allocation4], 1
    %1234 = vsyncpa %s1233, 1

</llo_original>
